<compile_context>
chip_gen: v7x
topology: tpu7x:2x2x1
jax: 0.10.0
libtpu: 0.0.40
codegen_flags: <defaults>
</compile_context>

<pallas_src>
import functools

import jax
import jax.numpy as jnp
from jax import lax
from jax.experimental import pallas as pl
from jax.experimental.pallas import tpu as pltpu

_LANE = 128


def _round_up(v, m):
    return (v + m - 1) // m * m


# ------------------------------ fused kernel ---------------------------------

def _depth_wise_fused_kernel(x_ref, w1_ref, pg_ref, w3_ref, po_ref,
                             o_ref, even_ref, odd_ref, *, H, W, Ho, Wo):
    """Nb batch elements: 1x1 conv+BN+PReLU -> 3x3 depthwise (stride 2, pad 1)
    +BN+PReLU -> 1x1 conv+BN.  All intermediates stay in VMEM.

    Scratch layout (polyphase, padded-row index r = y1 row r-1, row 0 = top pad):
      even_ref (Nb, H+1, Wo,   Gp): y1 even columns.
      odd_ref  (Nb, H+1, Wo+8, Gp): y1 odd columns at col offset 8; col 7 = left pad.
    Invariant: interior writes never touch row 0 or cols 0..7 of odd_ref."""
    Nb = x_ref.shape[0]
    Cin = x_ref.shape[3]
    Gp = w1_ref.shape[1]
    Cp = w3_ref.shape[1]
    f32 = jnp.float32

    w1 = w1_ref[...]                       # (Cin, Gp)
    pg = pg_ref[...]                       # (16, Gp): rows 0..8 dw taps, 9..14 BN/PReLU
    s1, b1, a1 = pg[9], pg[10], pg[11]
    s2, b2, a2 = pg[12], pg[13], pg[14]

    # ---- zero the 1-pixel top/left halo (aligned stores; redone every step so
    # correctness does not depend on which TensorCore ran grid step 0).
    even_ref[:, pl.ds(0, 1), :, :] = jnp.zeros((Nb, 1, Wo, Gp), f32)
    odd_ref[:, pl.ds(0, 1), :, :] = jnp.zeros((Nb, 1, Wo + 8, Gp), f32)
    odd_ref[:, pl.ds(1, H), pl.ds(0, 8), :] = jnp.zeros((Nb, H, 8, Gp), f32)

    # ---- stage 1: 1x1 conv + BN + PReLU, per column-parity phase (polyphase).
    def stage1(xp):                        # (Nb, H, Wo, Cin) -> (Nb, H, Wo, Gp)
        v = jnp.dot(xp.reshape(Nb * H * Wo, Cin), w1,
                    preferred_element_type=f32)
        v = v * s1 + b1
        v = jnp.where(v > 0, v, a1 * v)    # per-channel PReLU
        return v.reshape(Nb, H, Wo, Gp)

    x_even = x_ref[:, :, pl.ds(0, Wo, stride=2), :]     # only 2 strided reads
    x_odd = x_ref[:, :, pl.ds(1, Wo, stride=2), :]
    even_ref[:, pl.ds(1, H), :, :] = stage1(x_even)               # aligned
    odd_ref[:, pl.ds(1, H), pl.ds(8, Wo), :] = stage1(x_odd)      # aligned (off 8)

    # ---- stage 2: 3x3 depthwise conv, stride 2, pad 1 (+ BN + PReLU).
    # Rows are strided only on the cheap outer axis; columns are contiguous.
    acc = None
    for kh in range(3):
        rows = pl.ds(kh, Ho, stride=2)
        t_w0 = odd_ref[:, rows, pl.ds(7, Wo), :]   # kw=0: odd cols shifted (+zero pad)
        t_w1 = even_ref[:, rows, :, :]             # kw=1: even cols
        t_w2 = odd_ref[:, rows, pl.ds(8, Wo), :]   # kw=2: odd cols
        term = (t_w0 * pg[3 * kh + 0]
                + t_w1 * pg[3 * kh + 1]
                + t_w2 * pg[3 * kh + 2])
        acc = term if acc is None else acc + term
    y2 = acc * s2 + b2
    y2 = jnp.where(y2 > 0, y2, a2 * y2)

    # ---- stage 3: 1x1 projection + BN (no activation); lane-dense output store.
    po = po_ref[...]                        # (2, Cp): s3, b3
    y3 = jnp.dot(y2.reshape(Nb * Ho * Wo, Gp), w3_ref[...],
                 preferred_element_type=f32)
    y3 = y3 * po[0] + po[1]
    o_ref[...] = y3.reshape(Nb, Ho, Wo, Cp).astype(o_ref.dtype)


# ------------------------------ batch-block pick ------------------------------

def _pick_batch_block(N, H, W, Ho, Wo, Cin, Gp, Cp,
                      budget_bytes=12 * 1024 * 1024):
    """Largest divisor of N whose per-step VMEM footprint (with (8,128) tile
    padding and double-buffered input/output blocks) fits the budget."""
    per_b = 4 * (
        2 * H * _round_up(W, 8) * _round_up(Cin, _LANE)     # x block, double-buffered
        + (H + 1) * _round_up(Wo, 8) * Gp                   # even scratch
        + (H + 1) * _round_up(Wo + 8, 8) * Gp               # odd scratch
        + 2 * Ho * _round_up(Wo, 8) * Cp)                   # out block, double-buffered
    nb = max(1, min(N, budget_bytes // max(per_b, 1)))
    while N % nb:
        nb -= 1
    return nb


# --------------------------------- wrappers -----------------------------------

def depth_wise_forward_nhwc(x_nhwc, p):
    """Production entry point: NHWC in, NHWC out, no layout round-trips."""
    N, H, W, Cin = x_nhwc.shape
    assert H % 2 == 0 and W % 2 == 0, \
        "only the default config (3x3, stride 2, pad 1) with even H/W is implemented"
    Ho, Wo = H // 2, W // 2
    assert Wo % 8 == 0, \
        "Wo must be a multiple of 8 so in-kernel reshapes/stores stay tile-aligned"

    Gp = p["w1"].shape[1]
    Cp = p["w3"].shape[1]
    Cout = p["out_c"]
    Nb = _pick_batch_block(N, H, W, Ho, Wo, Cin, Gp, Cp)

    kernel = functools.partial(_depth_wise_fused_kernel, H=H, W=W, Ho=Ho, Wo=Wo)
    const2d = lambda b: (0, 0)  # noqa: E731  (untiled packed weights/params)

    y_pad = pl.pallas_call(
        kernel,
        out_shape=jax.ShapeDtypeStruct((N, Ho, Wo, Cp), jnp.float32),
        grid=(N // Nb,),
        in_specs=[
            pl.BlockSpec((Nb, H, W, Cin), lambda b: (b, 0, 0, 0)),   # x
            pl.BlockSpec((Cin, Gp), const2d),                        # w1 (lane-padded)
            pl.BlockSpec((16, Gp), const2d),                         # packed dw taps + BN/PReLU
            pl.BlockSpec((Gp, Cp), const2d),                         # w3 (padded both dims)
            pl.BlockSpec((2, Cp), const2d),                          # packed s3, b3
        ],
        out_specs=pl.BlockSpec((Nb, Ho, Wo, Cp), lambda b: (b, 0, 0, 0)),
        scratch_shapes=[
            pltpu.VMEM((Nb, H + 1, Wo, Gp), jnp.float32),            # even-column phase
            pltpu.VMEM((Nb, H + 1, Wo + 8, Gp), jnp.float32),        # odd-column phase (+pad col)
        ],
        compiler_params=pltpu.CompilerParams(
            dimension_semantics=("parallel",),
            vmem_limit_bytes=32 * 1024 * 1024,
        ),
    )(x_nhwc, p["w1"], p["pg"], p["w3"], p["po"])

    return y_pad[..., :Cout]                               # drop lane padding (no-op if Cout%128==0)


def depth_wise_forward(x_nchw, p):
    """NCHW compatibility shim for the PyTorch-layout test.
    TODO(synk): in production keep the surrounding network NHWC end-to-end so
    these two transposes (extra HBM passes) disappear."""
    x_nhwc = jnp.transpose(x_nchw, (0, 2, 3, 1)).astype(jnp.float32)
    y_nhwc = depth_wise_forward_nhwc(x_nhwc, p)
    return jnp.transpose(y_nhwc, (0, 3, 1, 2))


# ---------------------- deterministic parameter init -------------------------

def init_params(key, in_c, out_c, groups):
    eps = 1e-5
    ks = jax.random.split(key, 12)

    # PyTorch-layout conv weights (OIHW), no bias.
    w1_oihw = 0.2 * jax.random.normal(ks[0], (groups, in_c, 1, 1), jnp.float32)
    wdw_oihw = 0.2 * jax.random.normal(ks[1], (groups, 1, 3, 3), jnp.float32)
    w3_oihw = 0.2 * jax.random.normal(ks[2], (out_c, groups, 1, 1), jnp.float32)

    def bn_fold(kg, kb, km, kv, c):
        gamma = 1.0 + 0.1 * jax.random.normal(kg, (c,), jnp.float32)
        beta = 0.1 * jax.random.normal(kb, (c,), jnp.float32)
        mean = 0.1 * jax.random.normal(km, (c,), jnp.float32)
        var = jnp.abs(jax.random.normal(kv, (c,), jnp.float32)) + 0.5
        scale = gamma / jnp.sqrt(var + eps)
        bias = beta - mean * scale
        return scale, bias

    s1, b1 = bn_fold(ks[3], ks[4], ks[5], ks[6], groups)
    s2, b2 = bn_fold(ks[7], ks[8], ks[9], ks[10], groups)
    s3, b3 = bn_fold(*jax.random.split(ks[11], 4), out_c)
    a1 = jnp.full((groups,), 0.25, jnp.float32)            # PReLU default init
    a2 = jnp.full((groups,), 0.25, jnp.float32)

    # ---- packed, lane-padded kernel parameters (one-time, tiny) ----
    Gp = _round_up(groups, _LANE)
    Cp = _round_up(out_c, _LANE)

    def pad2d(a, rows, cols):
        return jnp.zeros((rows, cols), jnp.float32).at[:a.shape[0], :a.shape[1]].set(a)

    w1_k = pad2d(jnp.transpose(w1_oihw[:, :, 0, 0], (1, 0)), in_c, Gp)       # (Cin, Gp)
    w3_k = pad2d(jnp.transpose(w3_oihw[:, :, 0, 0], (1, 0)), Gp, Cp)         # (Gp, Cp)
    wdw_rows = jnp.transpose(wdw_oihw[:, 0], (1, 2, 0)).reshape(9, groups)   # row = kh*3+kw

    pg = jnp.zeros((16, Gp), jnp.float32)
    pg = pg.at[0:9, :groups].set(wdw_rows)
    pg = pg.at[9, :groups].set(s1).at[10, :groups].set(b1).at[11, :groups].set(a1)
    pg = pg.at[12, :groups].set(s2).at[13, :groups].set(b2).at[14, :groups].set(a2)

    po = jnp.zeros((2, Cp), jnp.float32).at[0, :out_c].set(s3).at[1, :out_c].set(b3)

    kernel_params = dict(w1=w1_k, pg=pg, w3=w3_k, po=po,
                         groups=groups, out_c=out_c)
    torch_layout = dict(w1=w1_oihw, wdw=wdw_oihw, w3=w3_oihw,
                        s1=s1, b1=b1, a1=a1, s2=s2, b2=b2, a2=a2, s3=s3, b3=b3)
    return kernel_params, torch_layout


# ----------------------- pure-JAX reference (NCHW) ---------------------------

def reference_forward(x, t):
    dn = ("NCHW", "OIHW", "NCHW")

    def bn_prelu(y, s, b, a=None):
        y = y * s[None, :, None, None] + b[None, :, None, None]
        if a is not None:
            y = jnp.where(y > 0, y, a[None, :, None, None] * y)
        return y

    y = lax.conv_general_dilated(x, t["w1"], (1, 1), "VALID", dimension_numbers=dn)
    y = bn_prelu(y, t["s1"], t["b1"], t["a1"])
    y = lax.conv_general_dilated(y, t["wdw"], (2, 2), ((1, 1), (1, 1)),
                                 dimension_numbers=dn,
                                 feature_group_count=t["wdw"].shape[0])
    y = bn_prelu(y, t["s2"], t["b2"], t["a2"])
    y = lax.conv_general_dilated(y, t["w3"], (1, 1), "VALID", dimension_numbers=dn)
    y = bn_prelu(y, t["s3"], t["b3"])
    return y


if __name__ == "__main__":
    key = jax.random.PRNGKey(0)
    kx, kp = jax.random.split(key)

    N, in_c, H, W = 2, 4, 16, 16
    groups, out_c = 8, 8                                   # Depth_Wise(in_c=4, out_c=8, groups=8)

    x = jax.random.normal(kx, (N, in_c, H, W), jnp.float32)
    params, torch_params = init_params(kp, in_c, out_c, groups)

    out = depth_wise_forward(x, params)
    out = jax.block_until_ready(out)

    ref = reference_forward(x, torch_params)
    assert out.shape == (N, out_c, H // 2, W // 2), out.shape
    assert jnp.allclose(out, ref, atol=1e-4, rtol=1e-4), float(jnp.max(jnp.abs(out - ref)))

    print("KERNEL_OK")
</pallas_src>

<mosaic_0001>
module attributes {stable_mosaic.version = 11 : i64} {
  func.func @_depth_wise_fused_kernel(%arg0: i32, %arg1: memref<2x16x16x4xf32, #tpu.memory_space<vmem>>, %arg2: memref<4x128xf32, #tpu.memory_space<vmem>>, %arg3: memref<16x128xf32, #tpu.memory_space<vmem>>, %arg4: memref<128x128xf32, #tpu.memory_space<vmem>>, %arg5: memref<2x128xf32, #tpu.memory_space<vmem>>, %arg6: memref<2x8x8x128xf32, #tpu.memory_space<vmem>>, %arg7: memref<2x17x8x128xf32, #tpu.memory_space<vmem>>, %arg8: memref<2x17x16x128xf32, #tpu.memory_space<vmem>>) attributes {dimension_semantics = [#tpu.dimension_semantics<parallel>], iteration_bounds = array<i64: 1>, scalar_prefetch = 0 : i64, scratch_operands = 2 : i64, tpu.core_type = #tpu.core_type<tc>, window_params = [{transform_indices = @transform_0, window_bounds = array<i64: 2, 16, 16, 4>}, {pipeline_mode = #tpu.pipeline_mode<synchronous>, transform_indices = @transform_1, window_bounds = array<i64: 4, 128>}, {pipeline_mode = #tpu.pipeline_mode<synchronous>, transform_indices = @transform_2, window_bounds = array<i64: 16, 128>}, {pipeline_mode = #tpu.pipeline_mode<synchronous>, transform_indices = @transform_3, window_bounds = array<i64: 128, 128>}, {pipeline_mode = #tpu.pipeline_mode<synchronous>, transform_indices = @transform_4, window_bounds = array<i64: 2, 128>}, {transform_indices = @transform_5, window_bounds = array<i64: 2, 8, 8, 128>}]} {
    %c0 = arith.constant 0 : index
    %c0_0 = arith.constant 0 : index
    %0 = vector.load %arg2[%c0, %c0_0] : memref<4x128xf32, #tpu.memory_space<vmem>>, vector<4x128xf32>
    %c0_1 = arith.constant 0 : index
    %c0_2 = arith.constant 0 : index
    %1 = vector.load %arg3[%c0_1, %c0_2] : memref<16x128xf32, #tpu.memory_space<vmem>>, vector<16x128xf32>
    %2 = vector.extract_strided_slice %1 {offsets = [9, 0], sizes = [1, 128], strides = [1, 1]} : vector<16x128xf32> to vector<1x128xf32>
    %3 = vector.shape_cast %2 : vector<1x128xf32> to vector<128xf32>
    %4 = vector.extract_strided_slice %1 {offsets = [10, 0], sizes = [1, 128], strides = [1, 1]} : vector<16x128xf32> to vector<1x128xf32>
    %5 = vector.shape_cast %4 : vector<1x128xf32> to vector<128xf32>
    %6 = vector.extract_strided_slice %1 {offsets = [11, 0], sizes = [1, 128], strides = [1, 1]} : vector<16x128xf32> to vector<1x128xf32>
    %7 = vector.shape_cast %6 : vector<1x128xf32> to vector<128xf32>
    %8 = vector.extract_strided_slice %1 {offsets = [12, 0], sizes = [1, 128], strides = [1, 1]} : vector<16x128xf32> to vector<1x128xf32>
    %9 = vector.shape_cast %8 : vector<1x128xf32> to vector<128xf32>
    %10 = vector.extract_strided_slice %1 {offsets = [13, 0], sizes = [1, 128], strides = [1, 1]} : vector<16x128xf32> to vector<1x128xf32>
    %11 = vector.shape_cast %10 : vector<1x128xf32> to vector<128xf32>
    %12 = vector.extract_strided_slice %1 {offsets = [14, 0], sizes = [1, 128], strides = [1, 1]} : vector<16x128xf32> to vector<1x128xf32>
    %13 = vector.shape_cast %12 : vector<1x128xf32> to vector<128xf32>
    %cst = arith.constant 0.000000e+00 : f32
    %14 = vector.broadcast %cst : f32 to vector<2x1x8x128xf32>
    %c0_3 = arith.constant 0 : index
    %c0_4 = arith.constant 0 : index
    %c0_5 = arith.constant 0 : index
    %c0_6 = arith.constant 0 : index
    %15 = vector.load %arg7[%c0_3, %c0_4, %c0_5, %c0_6] : memref<2x17x8x128xf32, #tpu.memory_space<vmem>>, vector<2x1x8x128xf32>
    tpu.vector_store %arg7[%c0_3, %c0_4, %c0_5, %c0_6], %14 {strides = array<i32>} : memref<2x17x8x128xf32, #tpu.memory_space<vmem>>, vector<2x1x8x128xf32>,
    %cst_7 = arith.constant 0.000000e+00 : f32
    %16 = vector.broadcast %cst_7 : f32 to vector<2x1x16x128xf32>
    %c0_8 = arith.constant 0 : index
    %c0_9 = arith.constant 0 : index
    %c0_10 = arith.constant 0 : index
    %c0_11 = arith.constant 0 : index
    %17 = vector.load %arg8[%c0_8, %c0_9, %c0_10, %c0_11] : memref<2x17x16x128xf32, #tpu.memory_space<vmem>>, vector<2x1x16x128xf32>
    tpu.vector_store %arg8[%c0_8, %c0_9, %c0_10, %c0_11], %16 {strides = array<i32>} : memref<2x17x16x128xf32, #tpu.memory_space<vmem>>, vector<2x1x16x128xf32>,
    %cst_12 = arith.constant 0.000000e+00 : f32
    %18 = vector.broadcast %cst_12 : f32 to vector<2x16x8x128xf32>
    %c0_13 = arith.constant 0 : index
    %c1 = arith.constant 1 : index
    %c0_14 = arith.constant 0 : index
    %c0_15 = arith.constant 0 : index
    %19 = vector.load %arg8[%c0_13, %c1, %c0_14, %c0_15] : memref<2x17x16x128xf32, #tpu.memory_space<vmem>>, vector<2x16x8x128xf32>
    tpu.vector_store %arg8[%c0_13, %c1, %c0_14, %c0_15], %18 {strides = array<i32>} : memref<2x17x16x128xf32, #tpu.memory_space<vmem>>, vector<2x16x8x128xf32>,
    %c0_16 = arith.constant 0 : index
    %c0_17 = arith.constant 0 : index
    %c0_18 = arith.constant 0 : index
    %c0_19 = arith.constant 0 : index
    %20 = tpu.strided_load %arg1[%c0_16, %c0_17, %c0_18, %c0_19] {strides = array<i32: 1, 1, 2, 1>} : memref<2x16x16x4xf32, #tpu.memory_space<vmem>>, vector<2x16x8x4xf32>
    %c0_20 = arith.constant 0 : index
    %c0_21 = arith.constant 0 : index
    %c1_22 = arith.constant 1 : index
    %c0_23 = arith.constant 0 : index
    %21 = tpu.strided_load %arg1[%c0_20, %c0_21, %c1_22, %c0_23] {strides = array<i32: 1, 1, 2, 1>} : memref<2x16x16x4xf32, #tpu.memory_space<vmem>>, vector<2x16x8x4xf32>
    %22 = vector.shape_cast %20 : vector<2x16x8x4xf32> to vector<256x4xf32>
    %cst_24 = arith.constant dense<0.000000e+00> : vector<256x128xf32>
    %23 = tpu.matmul %22, %0, %cst_24 {dimension_numbers = #tpu.dot_dimension_numbers<[1], [0], [0], [1], [0, 0, 1, 1], [], []>} : vector<256x4xf32>, vector<4x128xf32>, vector<256x128xf32> -> vector<256x128xf32>
    %24 = vector.shape_cast %3 : vector<128xf32> to vector<1x128xf32>
    %25 = vector.broadcast %24 : vector<1x128xf32> to vector<256x128xf32>
    %26 = arith.mulf %23, %25 : vector<256x128xf32>
    %27 = vector.shape_cast %5 : vector<128xf32> to vector<1x128xf32>
    %28 = vector.broadcast %27 : vector<1x128xf32> to vector<256x128xf32>
    %29 = arith.addf %26, %28 : vector<256x128xf32>
    %cst_25 = arith.constant 0.000000e+00 : f32
    %30 = vector.broadcast %cst_25 : f32 to vector<256x128xf32>
    %31 = arith.cmpf ogt, %29, %30 : vector<256x128xf32>
    %32 = vector.shape_cast %7 : vector<128xf32> to vector<1x128xf32>
    %33 = vector.broadcast %32 : vector<1x128xf32> to vector<256x128xf32>
    %34 = arith.mulf %33, %29 : vector<256x128xf32>
    %35 = arith.select %31, %29, %34 : vector<256x128xi1>, vector<256x128xf32>
    %36 = vector.shape_cast %35 : vector<256x128xf32> to vector<2x16x8x128xf32>
    %c0_26 = arith.constant 0 : index
    %c1_27 = arith.constant 1 : index
    %c0_28 = arith.constant 0 : index
    %c0_29 = arith.constant 0 : index
    %37 = vector.load %arg7[%c0_26, %c1_27, %c0_28, %c0_29] : memref<2x17x8x128xf32, #tpu.memory_space<vmem>>, vector<2x16x8x128xf32>
    tpu.vector_store %arg7[%c0_26, %c1_27, %c0_28, %c0_29], %36 {strides = array<i32>} : memref<2x17x8x128xf32, #tpu.memory_space<vmem>>, vector<2x16x8x128xf32>,
    %38 = vector.shape_cast %21 : vector<2x16x8x4xf32> to vector<256x4xf32>
    %cst_30 = arith.constant dense<0.000000e+00> : vector<256x128xf32>
    %39 = tpu.matmul %38, %0, %cst_30 {dimension_numbers = #tpu.dot_dimension_numbers<[1], [0], [0], [1], [0, 0, 1, 1], [], []>} : vector<256x4xf32>, vector<4x128xf32>, vector<256x128xf32> -> vector<256x128xf32>
    %40 = vector.shape_cast %3 : vector<128xf32> to vector<1x128xf32>
    %41 = vector.broadcast %40 : vector<1x128xf32> to vector<256x128xf32>
    %42 = arith.mulf %39, %41 : vector<256x128xf32>
    %43 = vector.shape_cast %5 : vector<128xf32> to vector<1x128xf32>
    %44 = vector.broadcast %43 : vector<1x128xf32> to vector<256x128xf32>
    %45 = arith.addf %42, %44 : vector<256x128xf32>
    %cst_31 = arith.constant 0.000000e+00 : f32
    %46 = vector.broadcast %cst_31 : f32 to vector<256x128xf32>
    %47 = arith.cmpf ogt, %45, %46 : vector<256x128xf32>
    %48 = vector.shape_cast %7 : vector<128xf32> to vector<1x128xf32>
    %49 = vector.broadcast %48 : vector<1x128xf32> to vector<256x128xf32>
    %50 = arith.mulf %49, %45 : vector<256x128xf32>
    %51 = arith.select %47, %45, %50 : vector<256x128xi1>, vector<256x128xf32>
    %52 = vector.shape_cast %51 : vector<256x128xf32> to vector<2x16x8x128xf32>
    %c0_32 = arith.constant 0 : index
    %c1_33 = arith.constant 1 : index
    %c8 = arith.constant 8 : index
    %c0_34 = arith.constant 0 : index
    %53 = vector.load %arg8[%c0_32, %c1_33, %c8, %c0_34] : memref<2x17x16x128xf32, #tpu.memory_space<vmem>>, vector<2x16x8x128xf32>
    tpu.vector_store %arg8[%c0_32, %c1_33, %c8, %c0_34], %52 {strides = array<i32>} : memref<2x17x16x128xf32, #tpu.memory_space<vmem>>, vector<2x16x8x128xf32>,
    %c0_35 = arith.constant 0 : index
    %c0_36 = arith.constant 0 : index
    %c7 = arith.constant 7 : index
    %c0_37 = arith.constant 0 : index
    %54 = tpu.strided_load %arg8[%c0_35, %c0_36, %c7, %c0_37] {strides = array<i32: 1, 2, 1, 1>} : memref<2x17x16x128xf32, #tpu.memory_space<vmem>>, vector<2x8x8x128xf32>
    %c0_38 = arith.constant 0 : index
    %c0_39 = arith.constant 0 : index
    %c0_40 = arith.constant 0 : index
    %c0_41 = arith.constant 0 : index
    %55 = tpu.strided_load %arg7[%c0_38, %c0_39, %c0_40, %c0_41] {strides = array<i32: 1, 2, 1, 1>} : memref<2x17x8x128xf32, #tpu.memory_space<vmem>>, vector<2x8x8x128xf32>
    %c0_42 = arith.constant 0 : index
    %c0_43 = arith.constant 0 : index
    %c8_44 = arith.constant 8 : index
    %c0_45 = arith.constant 0 : index
    %56 = tpu.strided_load %arg8[%c0_42, %c0_43, %c8_44, %c0_45] {strides = array<i32: 1, 2, 1, 1>} : memref<2x17x16x128xf32, #tpu.memory_space<vmem>>, vector<2x8x8x128xf32>
    %57 = vector.extract_strided_slice %1 {offsets = [0, 0], sizes = [1, 128], strides = [1, 1]} : vector<16x128xf32> to vector<1x128xf32>
    %58 = vector.shape_cast %57 : vector<1x128xf32> to vector<128xf32>
    %59 = vector.shape_cast %58 : vector<128xf32> to vector<1x1x1x128xf32>
    %60 = vector.broadcast %59 : vector<1x1x1x128xf32> to vector<2x8x8x128xf32>
    %61 = arith.mulf %54, %60 : vector<2x8x8x128xf32>
    %62 = vector.extract_strided_slice %1 {offsets = [1, 0], sizes = [1, 128], strides = [1, 1]} : vector<16x128xf32> to vector<1x128xf32>
    %63 = vector.shape_cast %62 : vector<1x128xf32> to vector<128xf32>
    %64 = vector.shape_cast %63 : vector<128xf32> to vector<1x1x1x128xf32>
    %65 = vector.broadcast %64 : vector<1x1x1x128xf32> to vector<2x8x8x128xf32>
    %66 = arith.mulf %55, %65 : vector<2x8x8x128xf32>
    %67 = arith.addf %61, %66 : vector<2x8x8x128xf32>
    %68 = vector.extract_strided_slice %1 {offsets = [2, 0], sizes = [1, 128], strides = [1, 1]} : vector<16x128xf32> to vector<1x128xf32>
    %69 = vector.shape_cast %68 : vector<1x128xf32> to vector<128xf32>
    %70 = vector.shape_cast %69 : vector<128xf32> to vector<1x1x1x128xf32>
    %71 = vector.broadcast %70 : vector<1x1x1x128xf32> to vector<2x8x8x128xf32>
    %72 = arith.mulf %56, %71 : vector<2x8x8x128xf32>
    %73 = arith.addf %67, %72 : vector<2x8x8x128xf32>
    %c0_46 = arith.constant 0 : index
    %c1_47 = arith.constant 1 : index
    %c7_48 = arith.constant 7 : index
    %c0_49 = arith.constant 0 : index
    %74 = tpu.strided_load %arg8[%c0_46, %c1_47, %c7_48, %c0_49] {strides = array<i32: 1, 2, 1, 1>} : memref<2x17x16x128xf32, #tpu.memory_space<vmem>>, vector<2x8x8x128xf32>
    %c0_50 = arith.constant 0 : index
    %c1_51 = arith.constant 1 : index
    %c0_52 = arith.constant 0 : index
    %c0_53 = arith.constant 0 : index
    %75 = tpu.strided_load %arg7[%c0_50, %c1_51, %c0_52, %c0_53] {strides = array<i32: 1, 2, 1, 1>} : memref<2x17x8x128xf32, #tpu.memory_space<vmem>>, vector<2x8x8x128xf32>
    %c0_54 = arith.constant 0 : index
    %c1_55 = arith.constant 1 : index
    %c8_56 = arith.constant 8 : index
    %c0_57 = arith.constant 0 : index
    %76 = tpu.strided_load %arg8[%c0_54, %c1_55, %c8_56, %c0_57] {strides = array<i32: 1, 2, 1, 1>} : memref<2x17x16x128xf32, #tpu.memory_space<vmem>>, vector<2x8x8x128xf32>
    %77 = vector.extract_strided_slice %1 {offsets = [3, 0], sizes = [1, 128], strides = [1, 1]} : vector<16x128xf32> to vector<1x128xf32>
    %78 = vector.shape_cast %77 : vector<1x128xf32> to vector<128xf32>
    %79 = vector.shape_cast %78 : vector<128xf32> to vector<1x1x1x128xf32>
    %80 = vector.broadcast %79 : vector<1x1x1x128xf32> to vector<2x8x8x128xf32>
    %81 = arith.mulf %74, %80 : vector<2x8x8x128xf32>
    %82 = vector.extract_strided_slice %1 {offsets = [4, 0], sizes = [1, 128], strides = [1, 1]} : vector<16x128xf32> to vector<1x128xf32>
    %83 = vector.shape_cast %82 : vector<1x128xf32> to vector<128xf32>
    %84 = vector.shape_cast %83 : vector<128xf32> to vector<1x1x1x128xf32>
    %85 = vector.broadcast %84 : vector<1x1x1x128xf32> to vector<2x8x8x128xf32>
    %86 = arith.mulf %75, %85 : vector<2x8x8x128xf32>
    %87 = arith.addf %81, %86 : vector<2x8x8x128xf32>
    %88 = vector.extract_strided_slice %1 {offsets = [5, 0], sizes = [1, 128], strides = [1, 1]} : vector<16x128xf32> to vector<1x128xf32>
    %89 = vector.shape_cast %88 : vector<1x128xf32> to vector<128xf32>
    %90 = vector.shape_cast %89 : vector<128xf32> to vector<1x1x1x128xf32>
    %91 = vector.broadcast %90 : vector<1x1x1x128xf32> to vector<2x8x8x128xf32>
    %92 = arith.mulf %76, %91 : vector<2x8x8x128xf32>
    %93 = arith.addf %87, %92 : vector<2x8x8x128xf32>
    %94 = arith.addf %73, %93 : vector<2x8x8x128xf32>
    %c0_58 = arith.constant 0 : index
    %c2 = arith.constant 2 : index
    %c7_59 = arith.constant 7 : index
    %c0_60 = arith.constant 0 : index
    %95 = tpu.strided_load %arg8[%c0_58, %c2, %c7_59, %c0_60] {strides = array<i32: 1, 2, 1, 1>} : memref<2x17x16x128xf32, #tpu.memory_space<vmem>>, vector<2x8x8x128xf32>
    %c0_61 = arith.constant 0 : index
    %c2_62 = arith.constant 2 : index
    %c0_63 = arith.constant 0 : index
    %c0_64 = arith.constant 0 : index
    %96 = tpu.strided_load %arg7[%c0_61, %c2_62, %c0_63, %c0_64] {strides = array<i32: 1, 2, 1, 1>} : memref<2x17x8x128xf32, #tpu.memory_space<vmem>>, vector<2x8x8x128xf32>
    %c0_65 = arith.constant 0 : index
    %c2_66 = arith.constant 2 : index
    %c8_67 = arith.constant 8 : index
    %c0_68 = arith.constant 0 : index
    %97 = tpu.strided_load %arg8[%c0_65, %c2_66, %c8_67, %c0_68] {strides = array<i32: 1, 2, 1, 1>} : memref<2x17x16x128xf32, #tpu.memory_space<vmem>>, vector<2x8x8x128xf32>
    %98 = vector.extract_strided_slice %1 {offsets = [6, 0], sizes = [1, 128], strides = [1, 1]} : vector<16x128xf32> to vector<1x128xf32>
    %99 = vector.shape_cast %98 : vector<1x128xf32> to vector<128xf32>
    %100 = vector.shape_cast %99 : vector<128xf32> to vector<1x1x1x128xf32>
    %101 = vector.broadcast %100 : vector<1x1x1x128xf32> to vector<2x8x8x128xf32>
    %102 = arith.mulf %95, %101 : vector<2x8x8x128xf32>
    %103 = vector.extract_strided_slice %1 {offsets = [7, 0], sizes = [1, 128], strides = [1, 1]} : vector<16x128xf32> to vector<1x128xf32>
    %104 = vector.shape_cast %103 : vector<1x128xf32> to vector<128xf32>
    %105 = vector.shape_cast %104 : vector<128xf32> to vector<1x1x1x128xf32>
    %106 = vector.broadcast %105 : vector<1x1x1x128xf32> to vector<2x8x8x128xf32>
    %107 = arith.mulf %96, %106 : vector<2x8x8x128xf32>
    %108 = arith.addf %102, %107 : vector<2x8x8x128xf32>
    %109 = vector.extract_strided_slice %1 {offsets = [8, 0], sizes = [1, 128], strides = [1, 1]} : vector<16x128xf32> to vector<1x128xf32>
    %110 = vector.shape_cast %109 : vector<1x128xf32> to vector<128xf32>
    %111 = vector.shape_cast %110 : vector<128xf32> to vector<1x1x1x128xf32>
    %112 = vector.broadcast %111 : vector<1x1x1x128xf32> to vector<2x8x8x128xf32>
    %113 = arith.mulf %97, %112 : vector<2x8x8x128xf32>
    %114 = arith.addf %108, %113 : vector<2x8x8x128xf32>
    %115 = arith.addf %94, %114 : vector<2x8x8x128xf32>
    %116 = vector.shape_cast %9 : vector<128xf32> to vector<1x1x1x128xf32>
    %117 = vector.broadcast %116 : vector<1x1x1x128xf32> to vector<2x8x8x128xf32>
    %118 = arith.mulf %115, %117 : vector<2x8x8x128xf32>
    %119 = vector.shape_cast %11 : vector<128xf32> to vector<1x1x1x128xf32>
    %120 = vector.broadcast %119 : vector<1x1x1x128xf32> to vector<2x8x8x128xf32>
    %121 = arith.addf %118, %120 : vector<2x8x8x128xf32>
    %cst_69 = arith.constant 0.000000e+00 : f32
    %122 = vector.broadcast %cst_69 : f32 to vector<2x8x8x128xf32>
    %123 = arith.cmpf ogt, %121, %122 : vector<2x8x8x128xf32>
    %124 = vector.shape_cast %13 : vector<128xf32> to vector<1x1x1x128xf32>
    %125 = vector.broadcast %124 : vector<1x1x1x128xf32> to vector<2x8x8x128xf32>
    %126 = arith.mulf %125, %121 : vector<2x8x8x128xf32>
    %127 = arith.select %123, %121, %126 : vector<2x8x8x128xi1>, vector<2x8x8x128xf32>
    %c0_70 = arith.constant 0 : index
    %c0_71 = arith.constant 0 : index
    %128 = vector.load %arg5[%c0_70, %c0_71] : memref<2x128xf32, #tpu.memory_space<vmem>>, vector<2x128xf32>
    %129 = vector.shape_cast %127 : vector<2x8x8x128xf32> to vector<128x128xf32>
    %c0_72 = arith.constant 0 : index
    %c0_73 = arith.constant 0 : index
    %130 = vector.load %arg4[%c0_72, %c0_73] : memref<128x128xf32, #tpu.memory_space<vmem>>, vector<128x128xf32>
    %cst_74 = arith.constant dense<0.000000e+00> : vector<128x128xf32>
    %131 = tpu.matmul %129, %130, %cst_74 {dimension_numbers = #tpu.dot_dimension_numbers<[1], [0], [0], [1], [0, 0, 1, 1], [], []>} : vector<128x128xf32>, vector<128x128xf32>, vector<128x128xf32> -> vector<128x128xf32>
    %132 = vector.extract_strided_slice %128 {offsets = [0, 0], sizes = [1, 128], strides = [1, 1]} : vector<2x128xf32> to vector<1x128xf32>
    %133 = vector.shape_cast %132 : vector<1x128xf32> to vector<128xf32>
    %134 = vector.shape_cast %133 : vector<128xf32> to vector<1x128xf32>
    %135 = vector.broadcast %134 : vector<1x128xf32> to vector<128x128xf32>
    %136 = arith.mulf %131, %135 : vector<128x128xf32>
    %137 = vector.extract_strided_slice %128 {offsets = [1, 0], sizes = [1, 128], strides = [1, 1]} : vector<2x128xf32> to vector<1x128xf32>
    %138 = vector.shape_cast %137 : vector<1x128xf32> to vector<128xf32>
    %139 = vector.shape_cast %138 : vector<128xf32> to vector<1x128xf32>
    %140 = vector.broadcast %139 : vector<1x128xf32> to vector<128x128xf32>
    %141 = arith.addf %136, %140 : vector<128x128xf32>
    %142 = vector.shape_cast %141 : vector<128x128xf32> to vector<2x8x8x128xf32>
    %c0_75 = arith.constant 0 : index
    %c0_76 = arith.constant 0 : index
    %c0_77 = arith.constant 0 : index
    %c0_78 = arith.constant 0 : index
    %143 = vector.load %arg6[%c0_75, %c0_76, %c0_77, %c0_78] : memref<2x8x8x128xf32, #tpu.memory_space<vmem>>, vector<2x8x8x128xf32>
    tpu.vector_store %arg6[%c0_75, %c0_76, %c0_77, %c0_78], %142 {strides = array<i32>} : memref<2x8x8x128xf32, #tpu.memory_space<vmem>>, vector<2x8x8x128xf32>,
    return
  }
  func.func @transform_0(%arg0: i32) -> (i32, i32, i32, i32) {
    %c0_i32 = arith.constant 0 : i32
    %c0_i32_0 = arith.constant 0 : i32
    %c0_i32_1 = arith.constant 0 : i32
    %c0_i32_2 = arith.constant 0 : i32
    return %arg0, %c0_i32, %c0_i32_0, %c0_i32_1 : i32, i32, i32, i32
  }
  func.func @transform_1(%arg0: i32) -> (i32, i32) {
    %c0_i32 = arith.constant 0 : i32
    %c0_i32_0 = arith.constant 0 : i32
    %c0_i32_1 = arith.constant 0 : i32
    return %c0_i32, %c0_i32_0 : i32, i32
  }
  func.func @transform_2(%arg0: i32) -> (i32, i32) {
    %c0_i32 = arith.constant 0 : i32
    %c0_i32_0 = arith.constant 0 : i32
    %c0_i32_1 = arith.constant 0 : i32
    return %c0_i32, %c0_i32_0 : i32, i32
  }
  func.func @transform_3(%arg0: i32) -> (i32, i32) {
    %c0_i32 = arith.constant 0 : i32
    %c0_i32_0 = arith.constant 0 : i32
    %c0_i32_1 = arith.constant 0 : i32
    return %c0_i32, %c0_i32_0 : i32, i32
  }
  func.func @transform_4(%arg0: i32) -> (i32, i32) {
    %c0_i32 = arith.constant 0 : i32
    %c0_i32_0 = arith.constant 0 : i32
    %c0_i32_1 = arith.constant 0 : i32
    return %c0_i32, %c0_i32_0 : i32, i32
  }
  func.func @transform_5(%arg0: i32) -> (i32, i32, i32, i32) {
    %c0_i32 = arith.constant 0 : i32
    %c0_i32_0 = arith.constant 0 : i32
    %c0_i32_1 = arith.constant 0 : i32
    %c0_i32_2 = arith.constant 0 : i32
    return %arg0, %c0_i32, %c0_i32_0, %c0_i32_1 : i32, i32, i32, i32
  }
}

</mosaic_0001>

<llo_original>
// kernel: tpu_custom_call.1
$region0: #{tpu_custom_call.1}
  #allocation0 [shape = 'u32[]', space=smem, size = 0x4, offset = 0x4, fixed_abs, tag = 'smem constant byte address 0x4 - core index']
  #allocation1 [shape = 'u32[144,128]{1,0:T(1,128)}', space=vmem, size = 0x12000, scoped, tag = 'internal scratch']
  #allocation2 [shape = 'f32[2,17,8,128]{3,2,1,0:T(8,128)}', space=vmem, size = 0x22000, scoped, tag = 'scratch operand']
  #allocation3 [shape = 'f32[2,17,16,128]{3,2,1,0:T(8,128)}', space=vmem, size = 0x44000, scoped, tag = 'scratch operand']
  %s0 = inlined_call_operand.vmem [shape: f32[2,16,16,4], index: 0, kind: input, shape index: {}]
  %s1 = inlined_call_operand.vmem [shape: f32[4,128], index: 1, kind: input, shape index: {}]
  %s2 = inlined_call_operand.vmem [shape: f32[16,128], index: 2, kind: input, shape index: {}]
  %s3 = inlined_call_operand.vmem [shape: f32[128,128], index: 3, kind: input, shape index: {}]
  %s4 = inlined_call_operand.vmem [shape: f32[2,128], index: 4, kind: input, shape index: {}]
  %s5 = inlined_call_operand.hbm [shape: f32[2,8,8,128], index: 5, kind: output, shape index: {}]
  %s6 = sld [smem:[#allocation0]]
  $region30: #{tpu_custom_call.1} parent=0
    _
  %s8 = ssub.s32 1, %s6
  %s9 = scalar_select 0, %s8, %s6
  $region1: #{tpu_custom_call.1} parent=0
    #allocation4 [shape = 'u8[65536]{0}', space=vmem, size = 0x10000, scoped, tag = 'output window, operand 0, single buffered']
    #allocation5 [shape = 's32[1]{0}', space=sflag, size = 0x4, scoped, tag = 'scoped memory for tpu_custom_call.1']
    %10 = vsyncpa [#allocation5], 0
    // Predicated region
    $region2: #{tpu_custom_call.1} parent=1 // pred_check
      _
    $region3: #{tpu_custom_call.1} parent=1 // pred_check_branch
      %12 = sbr.rel (0) target = $region5
    $region4: #{tpu_custom_call.1} parent=1 // pred_region
      _
    $region5: #{tpu_custom_call.1} parent=1 // pred_fallthru
      _
    // Predicated region
    $region6: #{tpu_custom_call.1} parent=1 // pred_check
      _
    $region7: #{tpu_custom_call.1} parent=1 // pred_check_branch
      %14 = sbr.rel (0) target = $region9
    $region8: #{tpu_custom_call.1} parent=1 // pred_region
      _
    $region9: #{tpu_custom_call.1} parent=1 // pred_fallthru
      _
    // Predicated region
    $region10: #{tpu_custom_call.1} parent=1 // pred_check
      _
    $region11: #{tpu_custom_call.1} parent=1 // pred_check_branch
      %16 = sbr.rel (0) target = $region13
    $region12: #{tpu_custom_call.1} parent=1 // pred_region
      _
    $region13: #{tpu_custom_call.1} parent=1 // pred_fallthru
      _
    // Predicated region
    $region14: #{tpu_custom_call.1} parent=1 // pred_check
      _
    $region15: #{tpu_custom_call.1} parent=1 // pred_check_branch
      %18 = sbr.rel (0) target = $region17
    $region16: #{tpu_custom_call.1} parent=1 // pred_region
      _
    $region17: #{tpu_custom_call.1} parent=1 // pred_fallthru
      _
    // Predicated region
    $region18: #{tpu_custom_call.1} parent=1 // pred_check
      _
    $region19: #{tpu_custom_call.1} parent=1 // pred_check_branch
      %20 = sbr.rel (0) target = $region21
    $region20: #{tpu_custom_call.1} parent=1 // pred_region
      _
    $region21: #{tpu_custom_call.1} parent=1 // pred_fallthru
      _
    %v21 = vld [vmem:[%s1] sm:$0xf]
    %v22 = vld [vmem:[%s2] sm:$0xff]
    %v23 = vld [vmem:[%s2 + $0x8] sm:$0xff]
    %24 = vst [vmem:[#allocation2] sm:$0xff] 0.0
    %25 = vst [vmem:[#allocation2 + $0x88] sm:$0xff] 0.0
    %26 = vst [vmem:[#allocation3] sm:$0xff] 0.0
    %27 = vst [vmem:[#allocation3 + $0x8] sm:$0xff] 0.0
    %28 = vst [vmem:[#allocation3 + $0x110] sm:$0xff] 0.0
    %29 = vst [vmem:[#allocation3 + $0x118] sm:$0xff] 0.0
    %s30 = scalar_lea.vmem [#allocation3], 16
    %31 = vst [vmem:[%s30] sm:$0xff] 0.0
    %32 = vst [vmem:[%s30 + $0x10] sm:$0xff] 0.0
    %33 = vst [vmem:[%s30 + $0x20] sm:$0xff] 0.0
    %34 = vst [vmem:[%s30 + $0x30] sm:$0xff] 0.0
    %35 = vst [vmem:[%s30 + $0x40] sm:$0xff] 0.0
    %36 = vst [vmem:[%s30 + $0x50] sm:$0xff] 0.0
    %37 = vst [vmem:[%s30 + $0x60] sm:$0xff] 0.0
    %38 = vst [vmem:[%s30 + $0x70] sm:$0xff] 0.0
    %39 = vst [vmem:[%s30 + $0x80] sm:$0xff] 0.0
    %40 = vst [vmem:[%s30 + $0x90] sm:$0xff] 0.0
    %41 = vst [vmem:[%s30 + $0xa0] sm:$0xff] 0.0
    %42 = vst [vmem:[%s30 + $0xb0] sm:$0xff] 0.0
    %43 = vst [vmem:[%s30 + $0xc0] sm:$0xff] 0.0
    %44 = vst [vmem:[%s30 + $0xd0] sm:$0xff] 0.0
    %45 = vst [vmem:[%s30 + $0xe0] sm:$0xff] 0.0
    %46 = vst [vmem:[%s30 + $0xf0] sm:$0xff] 0.0
    %47 = vst [vmem:[%s30 + $0x110] sm:$0xff] 0.0
    %48 = vst [vmem:[%s30 + $0x120] sm:$0xff] 0.0
    %49 = vst [vmem:[%s30 + $0x130] sm:$0xff] 0.0
    %50 = vst [vmem:[%s30 + $0x140] sm:$0xff] 0.0
    %51 = vst [vmem:[%s30 + $0x150] sm:$0xff] 0.0
    %52 = vst [vmem:[%s30 + $0x160] sm:$0xff] 0.0
    %53 = vst [vmem:[%s30 + $0x170] sm:$0xff] 0.0
    %54 = vst [vmem:[%s30 + $0x180] sm:$0xff] 0.0
    %55 = vst [vmem:[%s30 + $0x190] sm:$0xff] 0.0
    %56 = vst [vmem:[%s30 + $0x1a0] sm:$0xff] 0.0
    %57 = vst [vmem:[%s30 + $0x1b0] sm:$0xff] 0.0
    %58 = vst [vmem:[%s30 + $0x1c0] sm:$0xff] 0.0
    %59 = vst [vmem:[%s30 + $0x1d0] sm:$0xff] 0.0
    %60 = vst [vmem:[%s30 + $0x1e0] sm:$0xff] 0.0
    %61 = vst [vmem:[%s30 + $0x1f0] sm:$0xff] 0.0
    %62 = vst [vmem:[%s30 + $0x200] sm:$0xff] 0.0
    %v63 = vld [vmem:[%s0] ss:$2 sm:$0xff]
    %s64 = scalar_lea.vmem %s0, 16
    %v65 = vld [vmem:[%s64] ss:$2 sm:$0xff]
    %s66 = scalar_lea.vmem %s0, 32
    %v67 = vld [vmem:[%s66] ss:$2 sm:$0xff]
    %s68 = scalar_lea.vmem %s0, 48
    %v69 = vld [vmem:[%s68] ss:$2 sm:$0xff]
    %s70 = scalar_lea.vmem %s0, 64
    %v71 = vld [vmem:[%s70] ss:$2 sm:$0xff]
    %s72 = scalar_lea.vmem %s0, 80
    %v73 = vld [vmem:[%s72] ss:$2 sm:$0xff]
    %s74 = scalar_lea.vmem %s0, 96
    %v75 = vld [vmem:[%s74] ss:$2 sm:$0xff]
    %s76 = scalar_lea.vmem %s0, 112
    %v77 = vld [vmem:[%s76] ss:$2 sm:$0xff]
    %s78 = scalar_lea.vmem %s0, 128
    %v79 = vld [vmem:[%s78] ss:$2 sm:$0xff]
    %s80 = scalar_lea.vmem %s0, 144
    %v81 = vld [vmem:[%s80] ss:$2 sm:$0xff]
    %s82 = scalar_lea.vmem %s0, 160
    %v83 = vld [vmem:[%s82] ss:$2 sm:$0xff]
    %s84 = scalar_lea.vmem %s0, 176
    %v85 = vld [vmem:[%s84] ss:$2 sm:$0xff]
    %s86 = scalar_lea.vmem %s0, 192
    %v87 = vld [vmem:[%s86] ss:$2 sm:$0xff]
    %s88 = scalar_lea.vmem %s0, 208
    %v89 = vld [vmem:[%s88] ss:$2 sm:$0xff]
    %s90 = scalar_lea.vmem %s0, 224
    %v91 = vld [vmem:[%s90] ss:$2 sm:$0xff]
    %s92 = scalar_lea.vmem %s0, 240
    %v93 = vld [vmem:[%s92] ss:$2 sm:$0xff]
    %s94 = scalar_lea.vmem %s0, 256
    %v95 = vld [vmem:[%s94] ss:$2 sm:$0xff]
    %s96 = scalar_lea.vmem %s0, 272
    %v97 = vld [vmem:[%s96] ss:$2 sm:$0xff]
    %s98 = scalar_lea.vmem %s0, 288
    %v99 = vld [vmem:[%s98] ss:$2 sm:$0xff]
    %s100 = scalar_lea.vmem %s0, 304
    %v101 = vld [vmem:[%s100] ss:$2 sm:$0xff]
    %s102 = scalar_lea.vmem %s0, 320
    %v103 = vld [vmem:[%s102] ss:$2 sm:$0xff]
    %s104 = scalar_lea.vmem %s0, 336
    %v105 = vld [vmem:[%s104] ss:$2 sm:$0xff]
    %s106 = scalar_lea.vmem %s0, 352
    %v107 = vld [vmem:[%s106] ss:$2 sm:$0xff]
    %s108 = scalar_lea.vmem %s0, 368
    %v109 = vld [vmem:[%s108] ss:$2 sm:$0xff]
    %s110 = scalar_lea.vmem %s0, 384
    %v111 = vld [vmem:[%s110] ss:$2 sm:$0xff]
    %s112 = scalar_lea.vmem %s0, 400
    %v113 = vld [vmem:[%s112] ss:$2 sm:$0xff]
    %s114 = scalar_lea.vmem %s0, 416
    %v115 = vld [vmem:[%s114] ss:$2 sm:$0xff]
    %s116 = scalar_lea.vmem %s0, 432
    %v117 = vld [vmem:[%s116] ss:$2 sm:$0xff]
    %s118 = scalar_lea.vmem %s0, 448
    %v119 = vld [vmem:[%s118] ss:$2 sm:$0xff]
    %s120 = scalar_lea.vmem %s0, 464
    %v121 = vld [vmem:[%s120] ss:$2 sm:$0xff]
    %s122 = scalar_lea.vmem %s0, 480
    %v123 = vld [vmem:[%s122] ss:$2 sm:$0xff]
    %s124 = scalar_lea.vmem %s0, 496
    %v125 = vld [vmem:[%s124] ss:$2 sm:$0xff]
    %s126 = scalar_lea.vmem %s0, 1
    %v127 = vld [vmem:[%s126] ss:$2 sm:$0xff]
    %s128 = scalar_lea.vmem %s0, 17
    %v129 = vld [vmem:[%s128] ss:$2 sm:$0xff]
    %s130 = scalar_lea.vmem %s0, 33
    %v131 = vld [vmem:[%s130] ss:$2 sm:$0xff]
    %s132 = scalar_lea.vmem %s0, 49
    %v133 = vld [vmem:[%s132] ss:$2 sm:$0xff]
    %s134 = scalar_lea.vmem %s0, 65
    %v135 = vld [vmem:[%s134] ss:$2 sm:$0xff]
    %s136 = scalar_lea.vmem %s0, 81
    %v137 = vld [vmem:[%s136] ss:$2 sm:$0xff]
    %s138 = scalar_lea.vmem %s0, 97
    %v139 = vld [vmem:[%s138] ss:$2 sm:$0xff]
    %s140 = scalar_lea.vmem %s0, 113
    %v141 = vld [vmem:[%s140] ss:$2 sm:$0xff]
    %s142 = scalar_lea.vmem %s0, 129
    %v143 = vld [vmem:[%s142] ss:$2 sm:$0xff]
    %s144 = scalar_lea.vmem %s0, 145
    %v145 = vld [vmem:[%s144] ss:$2 sm:$0xff]
    %s146 = scalar_lea.vmem %s0, 161
    %v147 = vld [vmem:[%s146] ss:$2 sm:$0xff]
    %s148 = scalar_lea.vmem %s0, 177
    %v149 = vld [vmem:[%s148] ss:$2 sm:$0xff]
    %s150 = scalar_lea.vmem %s0, 193
    %v151 = vld [vmem:[%s150] ss:$2 sm:$0xff]
    %s152 = scalar_lea.vmem %s0, 209
    %v153 = vld [vmem:[%s152] ss:$2 sm:$0xff]
    %s154 = scalar_lea.vmem %s0, 225
    %v155 = vld [vmem:[%s154] ss:$2 sm:$0xff]
    %s156 = scalar_lea.vmem %s0, 241
    %v157 = vld [vmem:[%s156] ss:$2 sm:$0xff]
    %s158 = scalar_lea.vmem %s0, 257
    %v159 = vld [vmem:[%s158] ss:$2 sm:$0xff]
    %s160 = scalar_lea.vmem %s0, 273
    %v161 = vld [vmem:[%s160] ss:$2 sm:$0xff]
    %s162 = scalar_lea.vmem %s0, 289
    %v163 = vld [vmem:[%s162] ss:$2 sm:$0xff]
    %s164 = scalar_lea.vmem %s0, 305
    %v165 = vld [vmem:[%s164] ss:$2 sm:$0xff]
    %s166 = scalar_lea.vmem %s0, 321
    %v167 = vld [vmem:[%s166] ss:$2 sm:$0xff]
    %s168 = scalar_lea.vmem %s0, 337
    %v169 = vld [vmem:[%s168] ss:$2 sm:$0xff]
    %s170 = scalar_lea.vmem %s0, 353
    %v171 = vld [vmem:[%s170] ss:$2 sm:$0xff]
    %s172 = scalar_lea.vmem %s0, 369
    %v173 = vld [vmem:[%s172] ss:$2 sm:$0xff]
    %s174 = scalar_lea.vmem %s0, 385
    %v175 = vld [vmem:[%s174] ss:$2 sm:$0xff]
    %s176 = scalar_lea.vmem %s0, 401
    %v177 = vld [vmem:[%s176] ss:$2 sm:$0xff]
    %s178 = scalar_lea.vmem %s0, 417
    %v179 = vld [vmem:[%s178] ss:$2 sm:$0xff]
    %s180 = scalar_lea.vmem %s0, 433
    %v181 = vld [vmem:[%s180] ss:$2 sm:$0xff]
    %s182 = scalar_lea.vmem %s0, 449
    %v183 = vld [vmem:[%s182] ss:$2 sm:$0xff]
    %s184 = scalar_lea.vmem %s0, 465
    %v185 = vld [vmem:[%s184] ss:$2 sm:$0xff]
    %s186 = scalar_lea.vmem %s0, 481
    %v187 = vld [vmem:[%s186] ss:$2 sm:$0xff]
    %s188 = scalar_lea.vmem %s0, 497
    %v189 = vld [vmem:[%s188] ss:$2 sm:$0xff]
    %vm190 = vcmask 31744
    %v192 = vsel %vm190, %v63, 0
    %v195 = vsel %vm190, %v65, 0
    %v198 = vsel %vm190, %v67, 0
    %v201 = vsel %vm190, %v69, 0
    %v204 = vsel %vm190, %v71, 0
    %v207 = vsel %vm190, %v73, 0
    %v210 = vsel %vm190, %v75, 0
    %v213 = vsel %vm190, %v77, 0
    %v216 = vsel %vm190, %v79, 0
    %v219 = vsel %vm190, %v81, 0
    %v222 = vsel %vm190, %v83, 0
    %v225 = vsel %vm190, %v85, 0
    %v228 = vsel %vm190, %v87, 0
    %v231 = vsel %vm190, %v89, 0
    %v234 = vsel %vm190, %v91, 0
    %v237 = vsel %vm190, %v93, 0
    %v240 = vsel %vm190, %v95, 0
    %v243 = vsel %vm190, %v97, 0
    %v246 = vsel %vm190, %v99, 0
    %v249 = vsel %vm190, %v101, 0
    %v252 = vsel %vm190, %v103, 0
    %v255 = vsel %vm190, %v105, 0
    %v258 = vsel %vm190, %v107, 0
    %v261 = vsel %vm190, %v109, 0
    %v264 = vsel %vm190, %v111, 0
    %v267 = vsel %vm190, %v113, 0
    %v270 = vsel %vm190, %v115, 0
    %v273 = vsel %vm190, %v117, 0
    %v276 = vsel %vm190, %v119, 0
    %v279 = vsel %vm190, %v121, 0
    %v282 = vsel %vm190, %v123, 0
    %v285 = vsel %vm190, %v125, 0
    %vm287 = vcmask 1043456
    %v289 = vsel %vm287, %v21, 0
    %291 = vmatprep.subr.mxu0 0.0
    %292 = vmatpush1.msra.mxu0 %v289
    %293 = vmatprep.subr.mxu0 0.0
    %294 = vmatpush1.msra.mxu0 0.0
    %295 = vmatprep.subr.mxu0 0.0
    %296 = vmatpush1.msra.mxu0 0.0
    %297 = vmatprep.subr.mxu0 0.0
    %298 = vmatpush1.msra.mxu0 0.0
    %299 = vmatprep.subr.mxu0 0.0
    %300 = vmatpush1.msra.mxu0 0.0
    %301 = vmatprep.subr.mxu0 0.0
    %302 = vmatpush1.msra.mxu0 0.0
    %303 = vmatprep.subr.mxu0 0.0
    %304 = vmatpush1.msra.mxu0 0.0
    %305 = vmatprep.subr.mxu0 0.0
    %306 = vmatpush1.msra.mxu0 0.0
    %307 = vmatprep.subr.mxu0 0.0
    %308 = vmatpush1.msra.mxu0 0.0
    %309 = vmatprep.subr.mxu0 0.0
    %310 = vmatpush1.msra.mxu0 0.0
    %311 = vmatprep.subr.mxu0 0.0
    %312 = vmatpush1.msra.mxu0 0.0
    %313 = vmatprep.subr.mxu0 0.0
    %314 = vmatpush1.msra.mxu0 0.0
    %315 = vmatprep.subr.mxu0 0.0
    %316 = vmatpush1.msra.mxu0 0.0
    %317 = vmatprep.subr.mxu0 0.0
    %318 = vmatpush1.msra.mxu0 0.0
    %319 = vmatprep.subr.mxu0 0.0
    %320 = vmatpush1.msra.mxu0 0.0
    %321 = vmatprep.subr.mxu0 0.0
    %322 = vmatpush1.msra.mxu0 0.0
    %323 = vmatprep.subr.mxu0 0.0
    %324 = vmatpush1.msra.mxu0 0.0
    %325 = vmatprep.subr.mxu0 0.0
    %326 = vmatpush1.msra.mxu0 0.0
    %327 = vmatprep.subr.mxu0 0.0
    %328 = vmatpush1.msra.mxu0 0.0
    %329 = vmatprep.subr.mxu0 0.0
    %330 = vmatpush1.msra.mxu0 0.0
    %331 = vmatprep.subr.mxu0 0.0
    %332 = vmatpush1.msra.mxu0 0.0
    %333 = vmatprep.subr.mxu0 0.0
    %334 = vmatpush1.msra.mxu0 0.0
    %335 = vmatprep.subr.mxu0 0.0
    %336 = vmatpush1.msra.mxu0 0.0
    %337 = vmatprep.subr.mxu0 0.0
    %338 = vmatpush1.msra.mxu0 0.0
    %339 = vmatprep.subr.mxu0 0.0
    %340 = vmatpush1.msra.mxu0 0.0
    %341 = vmatprep.subr.mxu0 0.0
    %342 = vmatpush1.msra.mxu0 0.0
    %343 = vmatprep.subr.mxu0 0.0
    %344 = vmatpush1.msra.mxu0 0.0
    %345 = vmatprep.subr.mxu0 0.0
    %346 = vmatpush1.msra.mxu0 0.0
    %347 = vmatprep.subr.mxu0 0.0
    %348 = vmatpush1.msra.mxu0 0.0
    %349 = vmatprep.subr.mxu0 0.0
    %350 = vmatpush1.msra.mxu0 0.0
    %351 = vmatprep.subr.mxu0 0.0
    %352 = vmatpush1.msra.mxu0 0.0
    %353 = vmatprep.subr.mxu0 0.0
    %354 = vmatpush1.msra.mxu0 0.0
    %355 = vmatprep.mubr.f32.mxu0 0.0
    %356 = vmatmul.mubr.f32.gmra.mrb[0].mxu0 %v192
    %v357 = vpop.f32.mrb[0].mxu0
    %v358 = vadd.f32 0.0, %v357
    %v359 = vpop.f32.mrb[0].mxu0
    %360 = vmatprep.mubr.f32.mxu0 0.0
    %361 = vmatmul.mubr.f32.gmra.mrb[0].mxu0 %v195
    %v362 = vpop.f32.mrb[0].mxu0
    %v363 = vadd.f32 0.0, %v362
    %v364 = vpop.f32.mrb[0].mxu0
    %365 = vmatprep.mubr.f32.mxu0 0.0
    %366 = vmatmul.mubr.f32.gmra.mrb[0].mxu0 %v198
    %v367 = vpop.f32.mrb[0].mxu0
    %v368 = vadd.f32 0.0, %v367
    %v369 = vpop.f32.mrb[0].mxu0
    %370 = vmatprep.mubr.f32.mxu0 0.0
    %371 = vmatmul.mubr.f32.gmra.mrb[0].mxu0 %v201
    %v372 = vpop.f32.mrb[0].mxu0
    %v373 = vadd.f32 0.0, %v372
    %v374 = vpop.f32.mrb[0].mxu0
    %375 = vmatprep.mubr.f32.mxu0 0.0
    %376 = vmatmul.mubr.f32.gmra.mrb[0].mxu0 %v204
    %v377 = vpop.f32.mrb[0].mxu0
    %v378 = vadd.f32 0.0, %v377
    %v379 = vpop.f32.mrb[0].mxu0
    %380 = vmatprep.mubr.f32.mxu0 0.0
    %381 = vmatmul.mubr.f32.gmra.mrb[0].mxu0 %v207
    %v382 = vpop.f32.mrb[0].mxu0
    %v383 = vadd.f32 0.0, %v382
    %v384 = vpop.f32.mrb[0].mxu0
    %385 = vmatprep.mubr.f32.mxu0 0.0
    %386 = vmatmul.mubr.f32.gmra.mrb[0].mxu0 %v210
    %v387 = vpop.f32.mrb[0].mxu0
    %v388 = vadd.f32 0.0, %v387
    %v389 = vpop.f32.mrb[0].mxu0
    %390 = vmatprep.mubr.f32.mxu0 0.0
    %391 = vmatmul.mubr.f32.gmra.mrb[0].mxu0 %v213
    %v392 = vpop.f32.mrb[0].mxu0
    %v393 = vadd.f32 0.0, %v392
    %v394 = vpop.f32.mrb[0].mxu0
    %395 = vmatprep.mubr.f32.mxu0 0.0
    %396 = vmatmul.mubr.f32.gmra.mrb[0].mxu0 %v216
    %v397 = vpop.f32.mrb[0].mxu0
    %v398 = vadd.f32 0.0, %v397
    %v399 = vpop.f32.mrb[0].mxu0
    %400 = vmatprep.mubr.f32.mxu0 0.0
    %401 = vmatmul.mubr.f32.gmra.mrb[0].mxu0 %v219
    %v402 = vpop.f32.mrb[0].mxu0
    %v403 = vadd.f32 0.0, %v402
    %v404 = vpop.f32.mrb[0].mxu0
    %405 = vmatprep.mubr.f32.mxu0 0.0
    %406 = vmatmul.mubr.f32.gmra.mrb[0].mxu0 %v222
    %v407 = vpop.f32.mrb[0].mxu0
    %v408 = vadd.f32 0.0, %v407
    %v409 = vpop.f32.mrb[0].mxu0
    %410 = vmatprep.mubr.f32.mxu0 0.0
    %411 = vmatmul.mubr.f32.gmra.mrb[0].mxu0 %v225
    %v412 = vpop.f32.mrb[0].mxu0
    %v413 = vadd.f32 0.0, %v412
    %v414 = vpop.f32.mrb[0].mxu0
    %415 = vmatprep.mubr.f32.mxu0 0.0
    %416 = vmatmul.mubr.f32.gmra.mrb[0].mxu0 %v228
    %v417 = vpop.f32.mrb[0].mxu0
    %v418 = vadd.f32 0.0, %v417
    %v419 = vpop.f32.mrb[0].mxu0
    %420 = vmatprep.mubr.f32.mxu0 0.0
    %421 = vmatmul.mubr.f32.gmra.mrb[0].mxu0 %v231
    %v422 = vpop.f32.mrb[0].mxu0
    %v423 = vadd.f32 0.0, %v422
    %v424 = vpop.f32.mrb[0].mxu0
    %425 = vmatprep.mubr.f32.mxu0 0.0
    %426 = vmatmul.mubr.f32.gmra.mrb[0].mxu0 %v234
    %v427 = vpop.f32.mrb[0].mxu0
    %v428 = vadd.f32 0.0, %v427
    %v429 = vpop.f32.mrb[0].mxu0
    %430 = vmatprep.mubr.f32.mxu0 0.0
    %431 = vmatmul.mubr.f32.gmra.mrb[0].mxu0 %v237
    %v432 = vpop.f32.mrb[0].mxu0
    %v433 = vadd.f32 0.0, %v432
    %v434 = vpop.f32.mrb[0].mxu0
    %435 = vmatprep.mubr.f32.mxu0 0.0
    %436 = vmatmul.mubr.f32.gmra.mrb[0].mxu0 %v240
    %v437 = vpop.f32.mrb[0].mxu0
    %v438 = vadd.f32 0.0, %v437
    %v439 = vpop.f32.mrb[0].mxu0
    %440 = vmatprep.mubr.f32.mxu0 0.0
    %441 = vmatmul.mubr.f32.gmra.mrb[0].mxu0 %v243
    %v442 = vpop.f32.mrb[0].mxu0
    %v443 = vadd.f32 0.0, %v442
    %v444 = vpop.f32.mrb[0].mxu0
    %445 = vmatprep.mubr.f32.mxu0 0.0
    %446 = vmatmul.mubr.f32.gmra.mrb[0].mxu0 %v246
    %v447 = vpop.f32.mrb[0].mxu0
    %v448 = vadd.f32 0.0, %v447
    %v449 = vpop.f32.mrb[0].mxu0
    %450 = vmatprep.mubr.f32.mxu0 0.0
    %451 = vmatmul.mubr.f32.gmra.mrb[0].mxu0 %v249
    %v452 = vpop.f32.mrb[0].mxu0
    %v453 = vadd.f32 0.0, %v452
    %v454 = vpop.f32.mrb[0].mxu0
    %455 = vmatprep.mubr.f32.mxu0 0.0
    %456 = vmatmul.mubr.f32.gmra.mrb[0].mxu0 %v252
    %v457 = vpop.f32.mrb[0].mxu0
    %v458 = vadd.f32 0.0, %v457
    %v459 = vpop.f32.mrb[0].mxu0
    %460 = vmatprep.mubr.f32.mxu0 0.0
    %461 = vmatmul.mubr.f32.gmra.mrb[0].mxu0 %v255
    %v462 = vpop.f32.mrb[0].mxu0
    %v463 = vadd.f32 0.0, %v462
    %v464 = vpop.f32.mrb[0].mxu0
    %465 = vmatprep.mubr.f32.mxu0 0.0
    %466 = vmatmul.mubr.f32.gmra.mrb[0].mxu0 %v258
    %v467 = vpop.f32.mrb[0].mxu0
    %v468 = vadd.f32 0.0, %v467
    %v469 = vpop.f32.mrb[0].mxu0
    %470 = vmatprep.mubr.f32.mxu0 0.0
    %471 = vmatmul.mubr.f32.gmra.mrb[0].mxu0 %v261
    %v472 = vpop.f32.mrb[0].mxu0
    %v473 = vadd.f32 0.0, %v472
    %v474 = vpop.f32.mrb[0].mxu0
    %475 = vmatprep.mubr.f32.mxu0 0.0
    %476 = vmatmul.mubr.f32.gmra.mrb[0].mxu0 %v264
    %v477 = vpop.f32.mrb[0].mxu0
    %v478 = vadd.f32 0.0, %v477
    %v479 = vpop.f32.mrb[0].mxu0
    %480 = vmatprep.mubr.f32.mxu0 0.0
    %481 = vmatmul.mubr.f32.gmra.mrb[0].mxu0 %v267
    %v482 = vpop.f32.mrb[0].mxu0
    %v483 = vadd.f32 0.0, %v482
    %v484 = vpop.f32.mrb[0].mxu0
    %485 = vmatprep.mubr.f32.mxu0 0.0
    %486 = vmatmul.mubr.f32.gmra.mrb[0].mxu0 %v270
    %v487 = vpop.f32.mrb[0].mxu0
    %v488 = vadd.f32 0.0, %v487
    %v489 = vpop.f32.mrb[0].mxu0
    %490 = vmatprep.mubr.f32.mxu0 0.0
    %491 = vmatmul.mubr.f32.gmra.mrb[0].mxu0 %v273
    %v492 = vpop.f32.mrb[0].mxu0
    %v493 = vadd.f32 0.0, %v492
    %v494 = vpop.f32.mrb[0].mxu0
    %495 = vmatprep.mubr.f32.mxu0 0.0
    %496 = vmatmul.mubr.f32.gmra.mrb[0].mxu0 %v276
    %v497 = vpop.f32.mrb[0].mxu0
    %v498 = vadd.f32 0.0, %v497
    %v499 = vpop.f32.mrb[0].mxu0
    %500 = vmatprep.mubr.f32.mxu0 0.0
    %501 = vmatmul.mubr.f32.gmra.mrb[0].mxu0 %v279
    %v502 = vpop.f32.mrb[0].mxu0
    %v503 = vadd.f32 0.0, %v502
    %v504 = vpop.f32.mrb[0].mxu0
    %505 = vmatprep.mubr.f32.mxu0 0.0
    %506 = vmatmul.mubr.f32.gmra.mrb[0].mxu0 %v282
    %v507 = vpop.f32.mrb[0].mxu0
    %v508 = vadd.f32 0.0, %v507
    %v509 = vpop.f32.mrb[0].mxu0
    %510 = vmatprep.mubr.f32.mxu0 0.0
    %511 = vmatmul.mubr.f32.gmra.mrb[0].mxu0 %v285
    %v512 = vpop.f32.mrb[0].mxu0
    %v513 = vadd.f32 0.0, %v512
    %v514 = vpop.f32.mrb[0].mxu0
    %515 = vdwg.mxu0
    %v516 = vlaneseq
    %v517 = vshrl.u32 %v516, 7
    %v518 = vsub.s32 1, %v517
    %v519 = vrot.slane %v23, %v518
    %v520 = vmul.f32 %v358, %v519
    %v521 = vmul.f32 %v363, %v519
    %v522 = vmul.f32 %v368, %v519
    %v523 = vmul.f32 %v373, %v519
    %v524 = vmul.f32 %v378, %v519
    %v525 = vmul.f32 %v383, %v519
    %v526 = vmul.f32 %v388, %v519
    %v527 = vmul.f32 %v393, %v519
    %v528 = vmul.f32 %v398, %v519
    %v529 = vmul.f32 %v403, %v519
    %v530 = vmul.f32 %v408, %v519
    %v531 = vmul.f32 %v413, %v519
    %v532 = vmul.f32 %v418, %v519
    %v533 = vmul.f32 %v423, %v519
    %v534 = vmul.f32 %v428, %v519
    %v535 = vmul.f32 %v433, %v519
    %v536 = vmul.f32 %v438, %v519
    %v537 = vmul.f32 %v443, %v519
    %v538 = vmul.f32 %v448, %v519
    %v539 = vmul.f32 %v453, %v519
    %v540 = vmul.f32 %v458, %v519
    %v541 = vmul.f32 %v463, %v519
    %v542 = vmul.f32 %v468, %v519
    %v543 = vmul.f32 %v473, %v519
    %v544 = vmul.f32 %v478, %v519
    %v545 = vmul.f32 %v483, %v519
    %v546 = vmul.f32 %v488, %v519
    %v547 = vmul.f32 %v493, %v519
    %v548 = vmul.f32 %v498, %v519
    %v549 = vmul.f32 %v503, %v519
    %v550 = vmul.f32 %v508, %v519
    %v551 = vmul.f32 %v513, %v519
    %v552 = vlaneseq
    %v553 = vshrl.u32 %v552, 7
    %v554 = vsub.s32 2, %v553
    %v555 = vrot.slane %v23, %v554
    %v556 = vadd.f32 %v520, %v555
    %v557 = vadd.f32 %v521, %v555
    %v558 = vadd.f32 %v522, %v555
    %v559 = vadd.f32 %v523, %v555
    %v560 = vadd.f32 %v524, %v555
    %v561 = vadd.f32 %v525, %v555
    %v562 = vadd.f32 %v526, %v555
    %v563 = vadd.f32 %v527, %v555
    %v564 = vadd.f32 %v528, %v555
    %v565 = vadd.f32 %v529, %v555
    %v566 = vadd.f32 %v530, %v555
    %v567 = vadd.f32 %v531, %v555
    %v568 = vadd.f32 %v532, %v555
    %v569 = vadd.f32 %v533, %v555
    %v570 = vadd.f32 %v534, %v555
    %v571 = vadd.f32 %v535, %v555
    %v572 = vadd.f32 %v536, %v555
    %v573 = vadd.f32 %v537, %v555
    %v574 = vadd.f32 %v538, %v555
    %v575 = vadd.f32 %v539, %v555
    %v576 = vadd.f32 %v540, %v555
    %v577 = vadd.f32 %v541, %v555
    %v578 = vadd.f32 %v542, %v555
    %v579 = vadd.f32 %v543, %v555
    %v580 = vadd.f32 %v544, %v555
    %v581 = vadd.f32 %v545, %v555
    %v582 = vadd.f32 %v546, %v555
    %v583 = vadd.f32 %v547, %v555
    %v584 = vadd.f32 %v548, %v555
    %v585 = vadd.f32 %v549, %v555
    %v586 = vadd.f32 %v550, %v555
    %v587 = vadd.f32 %v551, %v555
    %vm588 = vcmp.gt.f32.partialorder %v556, 0.0
    %vm589 = vcmp.gt.f32.partialorder %v557, 0.0
    %vm590 = vcmp.gt.f32.partialorder %v558, 0.0
    %vm591 = vcmp.gt.f32.partialorder %v559, 0.0
    %vm592 = vcmp.gt.f32.partialorder %v560, 0.0
    %vm593 = vcmp.gt.f32.partialorder %v561, 0.0
    %vm594 = vcmp.gt.f32.partialorder %v562, 0.0
    %vm595 = vcmp.gt.f32.partialorder %v563, 0.0
    %vm596 = vcmp.gt.f32.partialorder %v564, 0.0
    %vm597 = vcmp.gt.f32.partialorder %v565, 0.0
    %vm598 = vcmp.gt.f32.partialorder %v566, 0.0
    %vm599 = vcmp.gt.f32.partialorder %v567, 0.0
    %vm600 = vcmp.gt.f32.partialorder %v568, 0.0
    %vm601 = vcmp.gt.f32.partialorder %v569, 0.0
    %vm602 = vcmp.gt.f32.partialorder %v570, 0.0
    %vm603 = vcmp.gt.f32.partialorder %v571, 0.0
    %vm604 = vcmp.gt.f32.partialorder %v572, 0.0
    %vm605 = vcmp.gt.f32.partialorder %v573, 0.0
    %vm606 = vcmp.gt.f32.partialorder %v574, 0.0
    %vm607 = vcmp.gt.f32.partialorder %v575, 0.0
    %vm608 = vcmp.gt.f32.partialorder %v576, 0.0
    %vm609 = vcmp.gt.f32.partialorder %v577, 0.0
    %vm610 = vcmp.gt.f32.partialorder %v578, 0.0
    %vm611 = vcmp.gt.f32.partialorder %v579, 0.0
    %vm612 = vcmp.gt.f32.partialorder %v580, 0.0
    %vm613 = vcmp.gt.f32.partialorder %v581, 0.0
    %vm614 = vcmp.gt.f32.partialorder %v582, 0.0
    %vm615 = vcmp.gt.f32.partialorder %v583, 0.0
    %vm616 = vcmp.gt.f32.partialorder %v584, 0.0
    %vm617 = vcmp.gt.f32.partialorder %v585, 0.0
    %vm618 = vcmp.gt.f32.partialorder %v586, 0.0
    %vm619 = vcmp.gt.f32.partialorder %v587, 0.0
    %v620 = vlaneseq
    %v621 = vshrl.u32 %v620, 7
    %v622 = vsub.s32 3, %v621
    %v623 = vrot.slane %v23, %v622
    %v624 = vmul.f32 %v623, %v556
    %v625 = vmul.f32 %v623, %v557
    %v626 = vmul.f32 %v623, %v558
    %v627 = vmul.f32 %v623, %v559
    %v628 = vmul.f32 %v623, %v560
    %v629 = vmul.f32 %v623, %v561
    %v630 = vmul.f32 %v623, %v562
    %v631 = vmul.f32 %v623, %v563
    %v632 = vmul.f32 %v623, %v564
    %v633 = vmul.f32 %v623, %v565
    %v634 = vmul.f32 %v623, %v566
    %v635 = vmul.f32 %v623, %v567
    %v636 = vmul.f32 %v623, %v568
    %v637 = vmul.f32 %v623, %v569
    %v638 = vmul.f32 %v623, %v570
    %v639 = vmul.f32 %v623, %v571
    %v640 = vmul.f32 %v623, %v572
    %v641 = vmul.f32 %v623, %v573
    %v642 = vmul.f32 %v623, %v574
    %v643 = vmul.f32 %v623, %v575
    %v644 = vmul.f32 %v623, %v576
    %v645 = vmul.f32 %v623, %v577
    %v646 = vmul.f32 %v623, %v578
    %v647 = vmul.f32 %v623, %v579
    %v648 = vmul.f32 %v623, %v580
    %v649 = vmul.f32 %v623, %v581
    %v650 = vmul.f32 %v623, %v582
    %v651 = vmul.f32 %v623, %v583
    %v652 = vmul.f32 %v623, %v584
    %v653 = vmul.f32 %v623, %v585
    %v654 = vmul.f32 %v623, %v586
    %v655 = vmul.f32 %v623, %v587
    %v656 = vsel %vm588, %v556, %v624
    %v657 = vsel %vm589, %v557, %v625
    %v658 = vsel %vm590, %v558, %v626
    %v659 = vsel %vm591, %v559, %v627
    %v660 = vsel %vm592, %v560, %v628
    %v661 = vsel %vm593, %v561, %v629
    %v662 = vsel %vm594, %v562, %v630
    %v663 = vsel %vm595, %v563, %v631
    %v664 = vsel %vm596, %v564, %v632
    %v665 = vsel %vm597, %v565, %v633
    %v666 = vsel %vm598, %v566, %v634
    %v667 = vsel %vm599, %v567, %v635
    %v668 = vsel %vm600, %v568, %v636
    %v669 = vsel %vm601, %v569, %v637
    %v670 = vsel %vm602, %v570, %v638
    %v671 = vsel %vm603, %v571, %v639
    %v672 = vsel %vm604, %v572, %v640
    %v673 = vsel %vm605, %v573, %v641
    %v674 = vsel %vm606, %v574, %v642
    %v675 = vsel %vm607, %v575, %v643
    %v676 = vsel %vm608, %v576, %v644
    %v677 = vsel %vm609, %v577, %v645
    %v678 = vsel %vm610, %v578, %v646
    %v679 = vsel %vm611, %v579, %v647
    %v680 = vsel %vm612, %v580, %v648
    %v681 = vsel %vm613, %v581, %v649
    %v682 = vsel %vm614, %v582, %v650
    %v683 = vsel %vm615, %v583, %v651
    %v684 = vsel %vm616, %v584, %v652
    %v685 = vsel %vm617, %v585, %v653
    %v686 = vsel %vm618, %v586, %v654
    %v687 = vsel %vm619, %v587, %v655
    %s688 = scalar_lea.vmem [#allocation2], 8
    %689 = vst [vmem:[%s688] sm:$0xff] %v656
    %690 = vst [vmem:[%s688 + $0x8] sm:$0xff] %v657
    %691 = vst [vmem:[%s688 + $0x10] sm:$0xff] %v658
    %692 = vst [vmem:[%s688 + $0x18] sm:$0xff] %v659
    %693 = vst [vmem:[%s688 + $0x20] sm:$0xff] %v660
    %694 = vst [vmem:[%s688 + $0x28] sm:$0xff] %v661
    %695 = vst [vmem:[%s688 + $0x30] sm:$0xff] %v662
    %696 = vst [vmem:[%s688 + $0x38] sm:$0xff] %v663
    %697 = vst [vmem:[%s688 + $0x40] sm:$0xff] %v664
    %698 = vst [vmem:[%s688 + $0x48] sm:$0xff] %v665
    %699 = vst [vmem:[%s688 + $0x50] sm:$0xff] %v666
    %700 = vst [vmem:[%s688 + $0x58] sm:$0xff] %v667
    %701 = vst [vmem:[%s688 + $0x60] sm:$0xff] %v668
    %702 = vst [vmem:[%s688 + $0x68] sm:$0xff] %v669
    %703 = vst [vmem:[%s688 + $0x70] sm:$0xff] %v670
    %704 = vst [vmem:[%s688 + $0x78] sm:$0xff] %v671
    %705 = vst [vmem:[%s688 + $0x88] sm:$0xff] %v672
    %706 = vst [vmem:[%s688 + $0x90] sm:$0xff] %v673
    %707 = vst [vmem:[%s688 + $0x98] sm:$0xff] %v674
    %708 = vst [vmem:[%s688 + $0xa0] sm:$0xff] %v675
    %709 = vst [vmem:[%s688 + $0xa8] sm:$0xff] %v676
    %710 = vst [vmem:[%s688 + $0xb0] sm:$0xff] %v677
    %711 = vst [vmem:[%s688 + $0xb8] sm:$0xff] %v678
    %712 = vst [vmem:[%s688 + $0xc0] sm:$0xff] %v679
    %713 = vst [vmem:[%s688 + $0xc8] sm:$0xff] %v680
    %714 = vst [vmem:[%s688 + $0xd0] sm:$0xff] %v681
    %715 = vst [vmem:[%s688 + $0xd8] sm:$0xff] %v682
    %716 = vst [vmem:[%s688 + $0xe0] sm:$0xff] %v683
    %717 = vst [vmem:[%s688 + $0xe8] sm:$0xff] %v684
    %718 = vst [vmem:[%s688 + $0xf0] sm:$0xff] %v685
    %719 = vst [vmem:[%s688 + $0xf8] sm:$0xff] %v686
    %720 = vst [vmem:[%s688 + $0x100] sm:$0xff] %v687
    %v722 = vsel %vm190, %v127, 0
    %v725 = vsel %vm190, %v129, 0
    %v728 = vsel %vm190, %v131, 0
    %v731 = vsel %vm190, %v133, 0
    %v734 = vsel %vm190, %v135, 0
    %v737 = vsel %vm190, %v137, 0
    %v740 = vsel %vm190, %v139, 0
    %v743 = vsel %vm190, %v141, 0
    %v746 = vsel %vm190, %v143, 0
    %v749 = vsel %vm190, %v145, 0
    %v752 = vsel %vm190, %v147, 0
    %v755 = vsel %vm190, %v149, 0
    %v758 = vsel %vm190, %v151, 0
    %v761 = vsel %vm190, %v153, 0
    %v764 = vsel %vm190, %v155, 0
    %v767 = vsel %vm190, %v157, 0
    %v770 = vsel %vm190, %v159, 0
    %v773 = vsel %vm190, %v161, 0
    %v776 = vsel %vm190, %v163, 0
    %v779 = vsel %vm190, %v165, 0
    %v782 = vsel %vm190, %v167, 0
    %v785 = vsel %vm190, %v169, 0
    %v788 = vsel %vm190, %v171, 0
    %v791 = vsel %vm190, %v173, 0
    %v794 = vsel %vm190, %v175, 0
    %v797 = vsel %vm190, %v177, 0
    %v800 = vsel %vm190, %v179, 0
    %v803 = vsel %vm190, %v181, 0
    %v806 = vsel %vm190, %v183, 0
    %v809 = vsel %vm190, %v185, 0
    %v812 = vsel %vm190, %v187, 0
    %v815 = vsel %vm190, %v189, 0
    %817 = vmatprep.subr.mxu0 0.0
    %818 = vmatpush1.msra.mxu0 %v289
    %819 = vmatprep.subr.mxu0 0.0
    %820 = vmatpush1.msra.mxu0 0.0
    %821 = vmatprep.subr.mxu0 0.0
    %822 = vmatpush1.msra.mxu0 0.0
    %823 = vmatprep.subr.mxu0 0.0
    %824 = vmatpush1.msra.mxu0 0.0
    %825 = vmatprep.subr.mxu0 0.0
    %826 = vmatpush1.msra.mxu0 0.0
    %827 = vmatprep.subr.mxu0 0.0
    %828 = vmatpush1.msra.mxu0 0.0
    %829 = vmatprep.subr.mxu0 0.0
    %830 = vmatpush1.msra.mxu0 0.0
    %831 = vmatprep.subr.mxu0 0.0
    %832 = vmatpush1.msra.mxu0 0.0
    %833 = vmatprep.subr.mxu0 0.0
    %834 = vmatpush1.msra.mxu0 0.0
    %835 = vmatprep.subr.mxu0 0.0
    %836 = vmatpush1.msra.mxu0 0.0
    %837 = vmatprep.subr.mxu0 0.0
    %838 = vmatpush1.msra.mxu0 0.0
    %839 = vmatprep.subr.mxu0 0.0
    %840 = vmatpush1.msra.mxu0 0.0
    %841 = vmatprep.subr.mxu0 0.0
    %842 = vmatpush1.msra.mxu0 0.0
    %843 = vmatprep.subr.mxu0 0.0
    %844 = vmatpush1.msra.mxu0 0.0
    %845 = vmatprep.subr.mxu0 0.0
    %846 = vmatpush1.msra.mxu0 0.0
    %847 = vmatprep.subr.mxu0 0.0
    %848 = vmatpush1.msra.mxu0 0.0
    %849 = vmatprep.subr.mxu0 0.0
    %850 = vmatpush1.msra.mxu0 0.0
    %851 = vmatprep.subr.mxu0 0.0
    %852 = vmatpush1.msra.mxu0 0.0
    %853 = vmatprep.subr.mxu0 0.0
    %854 = vmatpush1.msra.mxu0 0.0
    %855 = vmatprep.subr.mxu0 0.0
    %856 = vmatpush1.msra.mxu0 0.0
    %857 = vmatprep.subr.mxu0 0.0
    %858 = vmatpush1.msra.mxu0 0.0
    %859 = vmatprep.subr.mxu0 0.0
    %860 = vmatpush1.msra.mxu0 0.0
    %861 = vmatprep.subr.mxu0 0.0
    %862 = vmatpush1.msra.mxu0 0.0
    %863 = vmatprep.subr.mxu0 0.0
    %864 = vmatpush1.msra.mxu0 0.0
    %865 = vmatprep.subr.mxu0 0.0
    %866 = vmatpush1.msra.mxu0 0.0
    %867 = vmatprep.subr.mxu0 0.0
    %868 = vmatpush1.msra.mxu0 0.0
    %869 = vmatprep.subr.mxu0 0.0
    %870 = vmatpush1.msra.mxu0 0.0
    %871 = vmatprep.subr.mxu0 0.0
    %872 = vmatpush1.msra.mxu0 0.0
    %873 = vmatprep.subr.mxu0 0.0
    %874 = vmatpush1.msra.mxu0 0.0
    %875 = vmatprep.subr.mxu0 0.0
    %876 = vmatpush1.msra.mxu0 0.0
    %877 = vmatprep.subr.mxu0 0.0
    %878 = vmatpush1.msra.mxu0 0.0
    %879 = vmatprep.subr.mxu0 0.0
    %880 = vmatpush1.msra.mxu0 0.0
    %881 = vmatprep.mubr.f32.mxu0 0.0
    %882 = vmatmul.mubr.f32.gmra.mrb[0].mxu0 %v722
    %v883 = vpop.f32.mrb[0].mxu0
    %v884 = vadd.f32 0.0, %v883
    %v885 = vpop.f32.mrb[0].mxu0
    %886 = vmatprep.mubr.f32.mxu0 0.0
    %887 = vmatmul.mubr.f32.gmra.mrb[0].mxu0 %v725
    %v888 = vpop.f32.mrb[0].mxu0
    %v889 = vadd.f32 0.0, %v888
    %v890 = vpop.f32.mrb[0].mxu0
    %891 = vmatprep.mubr.f32.mxu0 0.0
    %892 = vmatmul.mubr.f32.gmra.mrb[0].mxu0 %v728
    %v893 = vpop.f32.mrb[0].mxu0
    %v894 = vadd.f32 0.0, %v893
    %v895 = vpop.f32.mrb[0].mxu0
    %896 = vmatprep.mubr.f32.mxu0 0.0
    %897 = vmatmul.mubr.f32.gmra.mrb[0].mxu0 %v731
    %v898 = vpop.f32.mrb[0].mxu0
    %v899 = vadd.f32 0.0, %v898
    %v900 = vpop.f32.mrb[0].mxu0
    %901 = vmatprep.mubr.f32.mxu0 0.0
    %902 = vmatmul.mubr.f32.gmra.mrb[0].mxu0 %v734
    %v903 = vpop.f32.mrb[0].mxu0
    %v904 = vadd.f32 0.0, %v903
    %v905 = vpop.f32.mrb[0].mxu0
    %906 = vmatprep.mubr.f32.mxu0 0.0
    %907 = vmatmul.mubr.f32.gmra.mrb[0].mxu0 %v737
    %v908 = vpop.f32.mrb[0].mxu0
    %v909 = vadd.f32 0.0, %v908
    %v910 = vpop.f32.mrb[0].mxu0
    %911 = vmatprep.mubr.f32.mxu0 0.0
    %912 = vmatmul.mubr.f32.gmra.mrb[0].mxu0 %v740
    %v913 = vpop.f32.mrb[0].mxu0
    %v914 = vadd.f32 0.0, %v913
    %v915 = vpop.f32.mrb[0].mxu0
    %916 = vmatprep.mubr.f32.mxu0 0.0
    %917 = vmatmul.mubr.f32.gmra.mrb[0].mxu0 %v743
    %v918 = vpop.f32.mrb[0].mxu0
    %v919 = vadd.f32 0.0, %v918
    %v920 = vpop.f32.mrb[0].mxu0
    %921 = vmatprep.mubr.f32.mxu0 0.0
    %922 = vmatmul.mubr.f32.gmra.mrb[0].mxu0 %v746
    %v923 = vpop.f32.mrb[0].mxu0
    %v924 = vadd.f32 0.0, %v923
    %v925 = vpop.f32.mrb[0].mxu0
    %926 = vmatprep.mubr.f32.mxu0 0.0
    %927 = vmatmul.mubr.f32.gmra.mrb[0].mxu0 %v749
    %v928 = vpop.f32.mrb[0].mxu0
    %v929 = vadd.f32 0.0, %v928
    %v930 = vpop.f32.mrb[0].mxu0
    %931 = vmatprep.mubr.f32.mxu0 0.0
    %932 = vmatmul.mubr.f32.gmra.mrb[0].mxu0 %v752
    %v933 = vpop.f32.mrb[0].mxu0
    %v934 = vadd.f32 0.0, %v933
    %v935 = vpop.f32.mrb[0].mxu0
    %936 = vmatprep.mubr.f32.mxu0 0.0
    %937 = vmatmul.mubr.f32.gmra.mrb[0].mxu0 %v755
    %v938 = vpop.f32.mrb[0].mxu0
    %v939 = vadd.f32 0.0, %v938
    %v940 = vpop.f32.mrb[0].mxu0
    %941 = vmatprep.mubr.f32.mxu0 0.0
    %942 = vmatmul.mubr.f32.gmra.mrb[0].mxu0 %v758
    %v943 = vpop.f32.mrb[0].mxu0
    %v944 = vadd.f32 0.0, %v943
    %v945 = vpop.f32.mrb[0].mxu0
    %946 = vmatprep.mubr.f32.mxu0 0.0
    %947 = vmatmul.mubr.f32.gmra.mrb[0].mxu0 %v761
    %v948 = vpop.f32.mrb[0].mxu0
    %v949 = vadd.f32 0.0, %v948
    %v950 = vpop.f32.mrb[0].mxu0
    %951 = vmatprep.mubr.f32.mxu0 0.0
    %952 = vmatmul.mubr.f32.gmra.mrb[0].mxu0 %v764
    %v953 = vpop.f32.mrb[0].mxu0
    %v954 = vadd.f32 0.0, %v953
    %v955 = vpop.f32.mrb[0].mxu0
    %956 = vmatprep.mubr.f32.mxu0 0.0
    %957 = vmatmul.mubr.f32.gmra.mrb[0].mxu0 %v767
    %v958 = vpop.f32.mrb[0].mxu0
    %v959 = vadd.f32 0.0, %v958
    %v960 = vpop.f32.mrb[0].mxu0
    %961 = vmatprep.mubr.f32.mxu0 0.0
    %962 = vmatmul.mubr.f32.gmra.mrb[0].mxu0 %v770
    %v963 = vpop.f32.mrb[0].mxu0
    %v964 = vadd.f32 0.0, %v963
    %v965 = vpop.f32.mrb[0].mxu0
    %966 = vmatprep.mubr.f32.mxu0 0.0
    %967 = vmatmul.mubr.f32.gmra.mrb[0].mxu0 %v773
    %v968 = vpop.f32.mrb[0].mxu0
    %v969 = vadd.f32 0.0, %v968
    %v970 = vpop.f32.mrb[0].mxu0
    %971 = vmatprep.mubr.f32.mxu0 0.0
    %972 = vmatmul.mubr.f32.gmra.mrb[0].mxu0 %v776
    %v973 = vpop.f32.mrb[0].mxu0
    %v974 = vadd.f32 0.0, %v973
    %v975 = vpop.f32.mrb[0].mxu0
    %976 = vmatprep.mubr.f32.mxu0 0.0
    %977 = vmatmul.mubr.f32.gmra.mrb[0].mxu0 %v779
    %v978 = vpop.f32.mrb[0].mxu0
    %v979 = vadd.f32 0.0, %v978
    %v980 = vpop.f32.mrb[0].mxu0
    %981 = vmatprep.mubr.f32.mxu0 0.0
    %982 = vmatmul.mubr.f32.gmra.mrb[0].mxu0 %v782
    %v983 = vpop.f32.mrb[0].mxu0
    %v984 = vadd.f32 0.0, %v983
    %v985 = vpop.f32.mrb[0].mxu0
    %986 = vmatprep.mubr.f32.mxu0 0.0
    %987 = vmatmul.mubr.f32.gmra.mrb[0].mxu0 %v785
    %v988 = vpop.f32.mrb[0].mxu0
    %v989 = vadd.f32 0.0, %v988
    %v990 = vpop.f32.mrb[0].mxu0
    %991 = vmatprep.mubr.f32.mxu0 0.0
    %992 = vmatmul.mubr.f32.gmra.mrb[0].mxu0 %v788
    %v993 = vpop.f32.mrb[0].mxu0
    %v994 = vadd.f32 0.0, %v993
    %v995 = vpop.f32.mrb[0].mxu0
    %996 = vmatprep.mubr.f32.mxu0 0.0
    %997 = vmatmul.mubr.f32.gmra.mrb[0].mxu0 %v791
    %v998 = vpop.f32.mrb[0].mxu0
    %v999 = vadd.f32 0.0, %v998
    %v1000 = vpop.f32.mrb[0].mxu0
    %1001 = vmatprep.mubr.f32.mxu0 0.0
    %1002 = vmatmul.mubr.f32.gmra.mrb[0].mxu0 %v794
    %v1003 = vpop.f32.mrb[0].mxu0
    %v1004 = vadd.f32 0.0, %v1003
    %v1005 = vpop.f32.mrb[0].mxu0
    %1006 = vmatprep.mubr.f32.mxu0 0.0
    %1007 = vmatmul.mubr.f32.gmra.mrb[0].mxu0 %v797
    %v1008 = vpop.f32.mrb[0].mxu0
    %v1009 = vadd.f32 0.0, %v1008
    %v1010 = vpop.f32.mrb[0].mxu0
    %1011 = vmatprep.mubr.f32.mxu0 0.0
    %1012 = vmatmul.mubr.f32.gmra.mrb[0].mxu0 %v800
    %v1013 = vpop.f32.mrb[0].mxu0
    %v1014 = vadd.f32 0.0, %v1013
    %v1015 = vpop.f32.mrb[0].mxu0
    %1016 = vmatprep.mubr.f32.mxu0 0.0
    %1017 = vmatmul.mubr.f32.gmra.mrb[0].mxu0 %v803
    %v1018 = vpop.f32.mrb[0].mxu0
    %v1019 = vadd.f32 0.0, %v1018
    %v1020 = vpop.f32.mrb[0].mxu0
    %1021 = vmatprep.mubr.f32.mxu0 0.0
    %1022 = vmatmul.mubr.f32.gmra.mrb[0].mxu0 %v806
    %v1023 = vpop.f32.mrb[0].mxu0
    %v1024 = vadd.f32 0.0, %v1023
    %v1025 = vpop.f32.mrb[0].mxu0
    %1026 = vmatprep.mubr.f32.mxu0 0.0
    %1027 = vmatmul.mubr.f32.gmra.mrb[0].mxu0 %v809
    %v1028 = vpop.f32.mrb[0].mxu0
    %v1029 = vadd.f32 0.0, %v1028
    %v1030 = vpop.f32.mrb[0].mxu0
    %1031 = vmatprep.mubr.f32.mxu0 0.0
    %1032 = vmatmul.mubr.f32.gmra.mrb[0].mxu0 %v812
    %v1033 = vpop.f32.mrb[0].mxu0
    %v1034 = vadd.f32 0.0, %v1033
    %v1035 = vpop.f32.mrb[0].mxu0
    %1036 = vmatprep.mubr.f32.mxu0 0.0
    %1037 = vmatmul.mubr.f32.gmra.mrb[0].mxu0 %v815
    %v1038 = vpop.f32.mrb[0].mxu0
    %v1039 = vadd.f32 0.0, %v1038
    %v1040 = vpop.f32.mrb[0].mxu0
    %1041 = vdwg.mxu0
    %v1042 = vmul.f32 %v884, %v519
    %v1043 = vmul.f32 %v889, %v519
    %v1044 = vmul.f32 %v894, %v519
    %v1045 = vmul.f32 %v899, %v519
    %v1046 = vmul.f32 %v904, %v519
    %v1047 = vmul.f32 %v909, %v519
    %v1048 = vmul.f32 %v914, %v519
    %v1049 = vmul.f32 %v919, %v519
    %v1050 = vmul.f32 %v924, %v519
    %v1051 = vmul.f32 %v929, %v519
    %v1052 = vmul.f32 %v934, %v519
    %v1053 = vmul.f32 %v939, %v519
    %v1054 = vmul.f32 %v944, %v519
    %v1055 = vmul.f32 %v949, %v519
    %v1056 = vmul.f32 %v954, %v519
    %v1057 = vmul.f32 %v959, %v519
    %v1058 = vmul.f32 %v964, %v519
    %v1059 = vmul.f32 %v969, %v519
    %v1060 = vmul.f32 %v974, %v519
    %v1061 = vmul.f32 %v979, %v519
    %v1062 = vmul.f32 %v984, %v519
    %v1063 = vmul.f32 %v989, %v519
    %v1064 = vmul.f32 %v994, %v519
    %v1065 = vmul.f32 %v999, %v519
    %v1066 = vmul.f32 %v1004, %v519
    %v1067 = vmul.f32 %v1009, %v519
    %v1068 = vmul.f32 %v1014, %v519
    %v1069 = vmul.f32 %v1019, %v519
    %v1070 = vmul.f32 %v1024, %v519
    %v1071 = vmul.f32 %v1029, %v519
    %v1072 = vmul.f32 %v1034, %v519
    %v1073 = vmul.f32 %v1039, %v519
    %v1074 = vadd.f32 %v1042, %v555
    %v1075 = vadd.f32 %v1043, %v555
    %v1076 = vadd.f32 %v1044, %v555
    %v1077 = vadd.f32 %v1045, %v555
    %v1078 = vadd.f32 %v1046, %v555
    %v1079 = vadd.f32 %v1047, %v555
    %v1080 = vadd.f32 %v1048, %v555
    %v1081 = vadd.f32 %v1049, %v555
    %v1082 = vadd.f32 %v1050, %v555
    %v1083 = vadd.f32 %v1051, %v555
    %v1084 = vadd.f32 %v1052, %v555
    %v1085 = vadd.f32 %v1053, %v555
    %v1086 = vadd.f32 %v1054, %v555
    %v1087 = vadd.f32 %v1055, %v555
    %v1088 = vadd.f32 %v1056, %v555
    %v1089 = vadd.f32 %v1057, %v555
    %v1090 = vadd.f32 %v1058, %v555
    %v1091 = vadd.f32 %v1059, %v555
    %v1092 = vadd.f32 %v1060, %v555
    %v1093 = vadd.f32 %v1061, %v555
    %v1094 = vadd.f32 %v1062, %v555
    %v1095 = vadd.f32 %v1063, %v555
    %v1096 = vadd.f32 %v1064, %v555
    %v1097 = vadd.f32 %v1065, %v555
    %v1098 = vadd.f32 %v1066, %v555
    %v1099 = vadd.f32 %v1067, %v555
    %v1100 = vadd.f32 %v1068, %v555
    %v1101 = vadd.f32 %v1069, %v555
    %v1102 = vadd.f32 %v1070, %v555
    %v1103 = vadd.f32 %v1071, %v555
    %v1104 = vadd.f32 %v1072, %v555
    %v1105 = vadd.f32 %v1073, %v555
    %vm1106 = vcmp.gt.f32.partialorder %v1074, 0.0
    %vm1107 = vcmp.gt.f32.partialorder %v1075, 0.0
    %vm1108 = vcmp.gt.f32.partialorder %v1076, 0.0
    %vm1109 = vcmp.gt.f32.partialorder %v1077, 0.0
    %vm1110 = vcmp.gt.f32.partialorder %v1078, 0.0
    %vm1111 = vcmp.gt.f32.partialorder %v1079, 0.0
    %vm1112 = vcmp.gt.f32.partialorder %v1080, 0.0
    %vm1113 = vcmp.gt.f32.partialorder %v1081, 0.0
    %vm1114 = vcmp.gt.f32.partialorder %v1082, 0.0
    %vm1115 = vcmp.gt.f32.partialorder %v1083, 0.0
    %vm1116 = vcmp.gt.f32.partialorder %v1084, 0.0
    %vm1117 = vcmp.gt.f32.partialorder %v1085, 0.0
    %vm1118 = vcmp.gt.f32.partialorder %v1086, 0.0
    %vm1119 = vcmp.gt.f32.partialorder %v1087, 0.0
    %vm1120 = vcmp.gt.f32.partialorder %v1088, 0.0
    %vm1121 = vcmp.gt.f32.partialorder %v1089, 0.0
    %vm1122 = vcmp.gt.f32.partialorder %v1090, 0.0
    %vm1123 = vcmp.gt.f32.partialorder %v1091, 0.0
    %vm1124 = vcmp.gt.f32.partialorder %v1092, 0.0
    %vm1125 = vcmp.gt.f32.partialorder %v1093, 0.0
    %vm1126 = vcmp.gt.f32.partialorder %v1094, 0.0
    %vm1127 = vcmp.gt.f32.partialorder %v1095, 0.0
    %vm1128 = vcmp.gt.f32.partialorder %v1096, 0.0
    %vm1129 = vcmp.gt.f32.partialorder %v1097, 0.0
    %vm1130 = vcmp.gt.f32.partialorder %v1098, 0.0
    %vm1131 = vcmp.gt.f32.partialorder %v1099, 0.0
    %vm1132 = vcmp.gt.f32.partialorder %v1100, 0.0
    %vm1133 = vcmp.gt.f32.partialorder %v1101, 0.0
    %vm1134 = vcmp.gt.f32.partialorder %v1102, 0.0
    %vm1135 = vcmp.gt.f32.partialorder %v1103, 0.0
    %vm1136 = vcmp.gt.f32.partialorder %v1104, 0.0
    %vm1137 = vcmp.gt.f32.partialorder %v1105, 0.0
    %v1138 = vmul.f32 %v623, %v1074
    %v1139 = vmul.f32 %v623, %v1075
    %v1140 = vmul.f32 %v623, %v1076
    %v1141 = vmul.f32 %v623, %v1077
    %v1142 = vmul.f32 %v623, %v1078
    %v1143 = vmul.f32 %v623, %v1079
    %v1144 = vmul.f32 %v623, %v1080
    %v1145 = vmul.f32 %v623, %v1081
    %v1146 = vmul.f32 %v623, %v1082
    %v1147 = vmul.f32 %v623, %v1083
    %v1148 = vmul.f32 %v623, %v1084
    %v1149 = vmul.f32 %v623, %v1085
    %v1150 = vmul.f32 %v623, %v1086
    %v1151 = vmul.f32 %v623, %v1087
    %v1152 = vmul.f32 %v623, %v1088
    %v1153 = vmul.f32 %v623, %v1089
    %v1154 = vmul.f32 %v623, %v1090
    %v1155 = vmul.f32 %v623, %v1091
    %v1156 = vmul.f32 %v623, %v1092
    %v1157 = vmul.f32 %v623, %v1093
    %v1158 = vmul.f32 %v623, %v1094
    %v1159 = vmul.f32 %v623, %v1095
    %v1160 = vmul.f32 %v623, %v1096
    %v1161 = vmul.f32 %v623, %v1097
    %v1162 = vmul.f32 %v623, %v1098
    %v1163 = vmul.f32 %v623, %v1099
    %v1164 = vmul.f32 %v623, %v1100
    %v1165 = vmul.f32 %v623, %v1101
    %v1166 = vmul.f32 %v623, %v1102
    %v1167 = vmul.f32 %v623, %v1103
    %v1168 = vmul.f32 %v623, %v1104
    %v1169 = vmul.f32 %v623, %v1105
    %v1170 = vsel %vm1106, %v1074, %v1138
    %v1171 = vsel %vm1107, %v1075, %v1139
    %v1172 = vsel %vm1108, %v1076, %v1140
    %v1173 = vsel %vm1109, %v1077, %v1141
    %v1174 = vsel %vm1110, %v1078, %v1142
    %v1175 = vsel %vm1111, %v1079, %v1143
    %v1176 = vsel %vm1112, %v1080, %v1144
    %v1177 = vsel %vm1113, %v1081, %v1145
    %v1178 = vsel %vm1114, %v1082, %v1146
    %v1179 = vsel %vm1115, %v1083, %v1147
    %v1180 = vsel %vm1116, %v1084, %v1148
    %v1181 = vsel %vm1117, %v1085, %v1149
    %v1182 = vsel %vm1118, %v1086, %v1150
    %v1183 = vsel %vm1119, %v1087, %v1151
    %v1184 = vsel %vm1120, %v1088, %v1152
    %v1185 = vsel %vm1121, %v1089, %v1153
    %v1186 = vsel %vm1122, %v1090, %v1154
    %v1187 = vsel %vm1123, %v1091, %v1155
    %v1188 = vsel %vm1124, %v1092, %v1156
    %v1189 = vsel %vm1125, %v1093, %v1157
    %v1190 = vsel %vm1126, %v1094, %v1158
    %v1191 = vsel %vm1127, %v1095, %v1159
    %v1192 = vsel %vm1128, %v1096, %v1160
    %v1193 = vsel %vm1129, %v1097, %v1161
    %v1194 = vsel %vm1130, %v1098, %v1162
    %v1195 = vsel %vm1131, %v1099, %v1163
    %v1196 = vsel %vm1132, %v1100, %v1164
    %v1197 = vsel %vm1133, %v1101, %v1165
    %v1198 = vsel %vm1134, %v1102, %v1166
    %v1199 = vsel %vm1135, %v1103, %v1167
    %v1200 = vsel %vm1136, %v1104, %v1168
    %v1201 = vsel %vm1137, %v1105, %v1169
    %1202 = vst [vmem:[%s30 + $0x8] sm:$0xff] %v1170
    %1203 = vst [vmem:[%s30 + $0x18] sm:$0xff] %v1171
    %1204 = vst [vmem:[%s30 + $0x28] sm:$0xff] %v1172
    %1205 = vst [vmem:[%s30 + $0x38] sm:$0xff] %v1173
    %1206 = vst [vmem:[%s30 + $0x48] sm:$0xff] %v1174
    %1207 = vst [vmem:[%s30 + $0x58] sm:$0xff] %v1175
    %1208 = vst [vmem:[%s30 + $0x68] sm:$0xff] %v1176
    %1209 = vst [vmem:[%s30 + $0x78] sm:$0xff] %v1177
    %1210 = vst [vmem:[%s30 + $0x88] sm:$0xff] %v1178
    %1211 = vst [vmem:[%s30 + $0x98] sm:$0xff] %v1179
    %1212 = vst [vmem:[%s30 + $0xa8] sm:$0xff] %v1180
    %1213 = vst [vmem:[%s30 + $0xb8] sm:$0xff] %v1181
    %1214 = vst [vmem:[%s30 + $0xc8] sm:$0xff] %v1182
    %1215 = vst [vmem:[%s30 + $0xd8] sm:$0xff] %v1183
    %1216 = vst [vmem:[%s30 + $0xe8] sm:$0xff] %v1184
    %1217 = vst [vmem:[%s30 + $0xf8] sm:$0xff] %v1185
    %1218 = vst [vmem:[%s30 + $0x118] sm:$0xff] %v1186
    %1219 = vst [vmem:[%s30 + $0x128] sm:$0xff] %v1187
    %1220 = vst [vmem:[%s30 + $0x138] sm:$0xff] %v1188
    %1221 = vst [vmem:[%s30 + $0x148] sm:$0xff] %v1189
    %1222 = vst [vmem:[%s30 + $0x158] sm:$0xff] %v1190
    %1223 = vst [vmem:[%s30 + $0x168] sm:$0xff] %v1191
    %1224 = vst [vmem:[%s30 + $0x178] sm:$0xff] %v1192
    %1225 = vst [vmem:[%s30 + $0x188] sm:$0xff] %v1193
    %1226 = vst [vmem:[%s30 + $0x198] sm:$0xff] %v1194
    %1227 = vst [vmem:[%s30 + $0x1a8] sm:$0xff] %v1195
    %1228 = vst [vmem:[%s30 + $0x1b8] sm:$0xff] %v1196
    %1229 = vst [vmem:[%s30 + $0x1c8] sm:$0xff] %v1197
    %1230 = vst [vmem:[%s30 + $0x1d8] sm:$0xff] %v1198
    %1231 = vst [vmem:[%s30 + $0x1e8] sm:$0xff] %v1199
    %1232 = vst [vmem:[%s30 + $0x1f8] sm:$0xff] %v1200
    %1233 = vst [vmem:[%s30 + $0x208] sm:$0xff] %v1201
    %v1234 = vld [vmem:[#allocation3 + $0x7] sm:$0xff]
    %v1235 = vld [vmem:[#allocation3 + $0x27] sm:$0xff]
    %v1236 = vld [vmem:[#allocation3 + $0x47] sm:$0xff]
    %v1237 = vld [vmem:[#allocation3 + $0x67] sm:$0xff]
    %v1238 = vld [vmem:[#allocation3 + $0x87] sm:$0xff]
    %v1239 = vld [vmem:[#allocation3 + $0xa7] sm:$0xff]
    %v1240 = vld [vmem:[#allocation3 + $0xc7] sm:$0xff]
    %v1241 = vld [vmem:[#allocation3 + $0xe7] sm:$0xff]
    %v1242 = vld [vmem:[#allocation3 + $0x117] sm:$0xff]
    %v1243 = vld [vmem:[#allocation3 + $0x137] sm:$0xff]
    %v1244 = vld [vmem:[#allocation3 + $0x157] sm:$0xff]
    %v1245 = vld [vmem:[#allocation3 + $0x177] sm:$0xff]
    %v1246 = vld [vmem:[#allocation3 + $0x197] sm:$0xff]
    %v1247 = vld [vmem:[#allocation3 + $0x1b7] sm:$0xff]
    %v1248 = vld [vmem:[#allocation3 + $0x1d7] sm:$0xff]
    %v1249 = vld [vmem:[#allocation3 + $0x1f7] sm:$0xff]
    %v1250 = vld [vmem:[#allocation2] sm:$0xff]
    %v1251 = vld [vmem:[#allocation2 + $0x10] sm:$0xff]
    %v1252 = vld [vmem:[#allocation2 + $0x20] sm:$0xff]
    %v1253 = vld [vmem:[#allocation2 + $0x30] sm:$0xff]
    %v1254 = vld [vmem:[#allocation2 + $0x40] sm:$0xff]
    %v1255 = vld [vmem:[#allocation2 + $0x50] sm:$0xff]
    %v1256 = vld [vmem:[#allocation2 + $0x60] sm:$0xff]
    %v1257 = vld [vmem:[#allocation2 + $0x70] sm:$0xff]
    %v1258 = vld [vmem:[#allocation2 + $0x88] sm:$0xff]
    %v1259 = vld [vmem:[#allocation2 + $0x98] sm:$0xff]
    %v1260 = vld [vmem:[#allocation2 + $0xa8] sm:$0xff]
    %v1261 = vld [vmem:[#allocation2 + $0xb8] sm:$0xff]
    %v1262 = vld [vmem:[#allocation2 + $0xc8] sm:$0xff]
    %v1263 = vld [vmem:[#allocation2 + $0xd8] sm:$0xff]
    %v1264 = vld [vmem:[#allocation2 + $0xe8] sm:$0xff]
    %v1265 = vld [vmem:[#allocation2 + $0xf8] sm:$0xff]
    %v1266 = vld [vmem:[#allocation3 + $0x8] sm:$0xff]
    %v1267 = vld [vmem:[#allocation3 + $0x28] sm:$0xff]
    %v1268 = vld [vmem:[#allocation3 + $0x48] sm:$0xff]
    %v1269 = vld [vmem:[#allocation3 + $0x68] sm:$0xff]
    %v1270 = vld [vmem:[#allocation3 + $0x88] sm:$0xff]
    %v1271 = vld [vmem:[#allocation3 + $0xa8] sm:$0xff]
    %v1272 = vld [vmem:[#allocation3 + $0xc8] sm:$0xff]
    %v1273 = vld [vmem:[#allocation3 + $0xe8] sm:$0xff]
    %v1274 = vld [vmem:[#allocation3 + $0x118] sm:$0xff]
    %v1275 = vld [vmem:[#allocation3 + $0x138] sm:$0xff]
    %v1276 = vld [vmem:[#allocation3 + $0x158] sm:$0xff]
    %v1277 = vld [vmem:[#allocation3 + $0x178] sm:$0xff]
    %v1278 = vld [vmem:[#allocation3 + $0x198] sm:$0xff]
    %v1279 = vld [vmem:[#allocation3 + $0x1b8] sm:$0xff]
    %v1280 = vld [vmem:[#allocation3 + $0x1d8] sm:$0xff]
    %v1281 = vld [vmem:[#allocation3 + $0x1f8] sm:$0xff]
    %v1282 = vlaneseq
    %v1283 = vshrl.u32 %v1282, 7
    %v1284 = vsub.s32 0, %v1283
    %v1285 = vrot.slane %v22, %v1284
    %v1286 = vmul.f32 %v1234, %v1285
    %v1287 = vmul.f32 %v1235, %v1285
    %v1288 = vmul.f32 %v1236, %v1285
    %v1289 = vmul.f32 %v1237, %v1285
    %v1290 = vmul.f32 %v1238, %v1285
    %v1291 = vmul.f32 %v1239, %v1285
    %v1292 = vmul.f32 %v1240, %v1285
    %v1293 = vmul.f32 %v1241, %v1285
    %v1294 = vmul.f32 %v1242, %v1285
    %v1295 = vmul.f32 %v1243, %v1285
    %v1296 = vmul.f32 %v1244, %v1285
    %v1297 = vmul.f32 %v1245, %v1285
    %v1298 = vmul.f32 %v1246, %v1285
    %v1299 = vmul.f32 %v1247, %v1285
    %v1300 = vmul.f32 %v1248, %v1285
    %v1301 = vmul.f32 %v1249, %v1285
    %v1302 = vlaneseq
    %v1303 = vshrl.u32 %v1302, 7
    %v1304 = vsub.s32 1, %v1303
    %v1305 = vrot.slane %v22, %v1304
    %v1306 = vmul.f32 %v1250, %v1305
    %v1307 = vmul.f32 %v1251, %v1305
    %v1308 = vmul.f32 %v1252, %v1305
    %v1309 = vmul.f32 %v1253, %v1305
    %v1310 = vmul.f32 %v1254, %v1305
    %v1311 = vmul.f32 %v1255, %v1305
    %v1312 = vmul.f32 %v1256, %v1305
    %v1313 = vmul.f32 %v1257, %v1305
    %v1314 = vmul.f32 %v1258, %v1305
    %v1315 = vmul.f32 %v1259, %v1305
    %v1316 = vmul.f32 %v1260, %v1305
    %v1317 = vmul.f32 %v1261, %v1305
    %v1318 = vmul.f32 %v1262, %v1305
    %v1319 = vmul.f32 %v1263, %v1305
    %v1320 = vmul.f32 %v1264, %v1305
    %v1321 = vmul.f32 %v1265, %v1305
    %v1322 = vadd.f32 %v1286, %v1306
    %v1323 = vadd.f32 %v1287, %v1307
    %v1324 = vadd.f32 %v1288, %v1308
    %v1325 = vadd.f32 %v1289, %v1309
    %v1326 = vadd.f32 %v1290, %v1310
    %v1327 = vadd.f32 %v1291, %v1311
    %v1328 = vadd.f32 %v1292, %v1312
    %v1329 = vadd.f32 %v1293, %v1313
    %v1330 = vadd.f32 %v1294, %v1314
    %v1331 = vadd.f32 %v1295, %v1315
    %v1332 = vadd.f32 %v1296, %v1316
    %v1333 = vadd.f32 %v1297, %v1317
    %v1334 = vadd.f32 %v1298, %v1318
    %v1335 = vadd.f32 %v1299, %v1319
    %v1336 = vadd.f32 %v1300, %v1320
    %v1337 = vadd.f32 %v1301, %v1321
    %v1338 = vlaneseq
    %v1339 = vshrl.u32 %v1338, 7
    %v1340 = vsub.s32 2, %v1339
    %v1341 = vrot.slane %v22, %v1340
    %v1342 = vmul.f32 %v1266, %v1341
    %v1343 = vmul.f32 %v1267, %v1341
    %v1344 = vmul.f32 %v1268, %v1341
    %v1345 = vmul.f32 %v1269, %v1341
    %v1346 = vmul.f32 %v1270, %v1341
    %v1347 = vmul.f32 %v1271, %v1341
    %v1348 = vmul.f32 %v1272, %v1341
    %v1349 = vmul.f32 %v1273, %v1341
    %v1350 = vmul.f32 %v1274, %v1341
    %v1351 = vmul.f32 %v1275, %v1341
    %v1352 = vmul.f32 %v1276, %v1341
    %v1353 = vmul.f32 %v1277, %v1341
    %v1354 = vmul.f32 %v1278, %v1341
    %v1355 = vmul.f32 %v1279, %v1341
    %v1356 = vmul.f32 %v1280, %v1341
    %v1357 = vmul.f32 %v1281, %v1341
    %v1358 = vadd.f32 %v1322, %v1342
    %v1359 = vadd.f32 %v1323, %v1343
    %v1360 = vadd.f32 %v1324, %v1344
    %v1361 = vadd.f32 %v1325, %v1345
    %v1362 = vadd.f32 %v1326, %v1346
    %v1363 = vadd.f32 %v1327, %v1347
    %v1364 = vadd.f32 %v1328, %v1348
    %v1365 = vadd.f32 %v1329, %v1349
    %v1366 = vadd.f32 %v1330, %v1350
    %v1367 = vadd.f32 %v1331, %v1351
    %v1368 = vadd.f32 %v1332, %v1352
    %v1369 = vadd.f32 %v1333, %v1353
    %v1370 = vadd.f32 %v1334, %v1354
    %v1371 = vadd.f32 %v1335, %v1355
    %v1372 = vadd.f32 %v1336, %v1356
    %v1373 = vadd.f32 %v1337, %v1357
    %v1374 = vld [vmem:[%s30 + $0x7] sm:$0xff]
    %v1375 = vld [vmem:[%s30 + $0x27] sm:$0xff]
    %v1376 = vld [vmem:[%s30 + $0x47] sm:$0xff]
    %v1377 = vld [vmem:[%s30 + $0x67] sm:$0xff]
    %v1378 = vld [vmem:[%s30 + $0x87] sm:$0xff]
    %v1379 = vld [vmem:[%s30 + $0xa7] sm:$0xff]
    %v1380 = vld [vmem:[%s30 + $0xc7] sm:$0xff]
    %v1381 = vld [vmem:[%s30 + $0xe7] sm:$0xff]
    %v1382 = vld [vmem:[%s30 + $0x117] sm:$0xff]
    %v1383 = vld [vmem:[%s30 + $0x137] sm:$0xff]
    %v1384 = vld [vmem:[%s30 + $0x157] sm:$0xff]
    %v1385 = vld [vmem:[%s30 + $0x177] sm:$0xff]
    %v1386 = vld [vmem:[%s30 + $0x197] sm:$0xff]
    %v1387 = vld [vmem:[%s30 + $0x1b7] sm:$0xff]
    %v1388 = vld [vmem:[%s30 + $0x1d7] sm:$0xff]
    %v1389 = vld [vmem:[%s30 + $0x1f7] sm:$0xff]
    %v1390 = vld [vmem:[%s688] sm:$0xff]
    %v1391 = vld [vmem:[%s688 + $0x10] sm:$0xff]
    %v1392 = vld [vmem:[%s688 + $0x20] sm:$0xff]
    %v1393 = vld [vmem:[%s688 + $0x30] sm:$0xff]
    %v1394 = vld [vmem:[%s688 + $0x40] sm:$0xff]
    %v1395 = vld [vmem:[%s688 + $0x50] sm:$0xff]
    %v1396 = vld [vmem:[%s688 + $0x60] sm:$0xff]
    %v1397 = vld [vmem:[%s688 + $0x70] sm:$0xff]
    %v1398 = vld [vmem:[%s688 + $0x88] sm:$0xff]
    %v1399 = vld [vmem:[%s688 + $0x98] sm:$0xff]
    %v1400 = vld [vmem:[%s688 + $0xa8] sm:$0xff]
    %v1401 = vld [vmem:[%s688 + $0xb8] sm:$0xff]
    %v1402 = vld [vmem:[%s688 + $0xc8] sm:$0xff]
    %v1403 = vld [vmem:[%s688 + $0xd8] sm:$0xff]
    %v1404 = vld [vmem:[%s688 + $0xe8] sm:$0xff]
    %v1405 = vld [vmem:[%s688 + $0xf8] sm:$0xff]
    %v1406 = vld [vmem:[%s30 + $0x8] sm:$0xff]
    %v1407 = vld [vmem:[%s30 + $0x28] sm:$0xff]
    %v1408 = vld [vmem:[%s30 + $0x48] sm:$0xff]
    %v1409 = vld [vmem:[%s30 + $0x68] sm:$0xff]
    %v1410 = vld [vmem:[%s30 + $0x88] sm:$0xff]
    %v1411 = vld [vmem:[%s30 + $0xa8] sm:$0xff]
    %v1412 = vld [vmem:[%s30 + $0xc8] sm:$0xff]
    %v1413 = vld [vmem:[%s30 + $0xe8] sm:$0xff]
    %v1414 = vld [vmem:[%s30 + $0x118] sm:$0xff]
    %v1415 = vld [vmem:[%s30 + $0x138] sm:$0xff]
    %v1416 = vld [vmem:[%s30 + $0x158] sm:$0xff]
    %v1417 = vld [vmem:[%s30 + $0x178] sm:$0xff]
    %v1418 = vld [vmem:[%s30 + $0x198] sm:$0xff]
    %v1419 = vld [vmem:[%s30 + $0x1b8] sm:$0xff]
    %v1420 = vld [vmem:[%s30 + $0x1d8] sm:$0xff]
    %v1421 = vld [vmem:[%s30 + $0x1f8] sm:$0xff]
    %v1422 = vlaneseq
    %v1423 = vshrl.u32 %v1422, 7
    %v1424 = vsub.s32 3, %v1423
    %v1425 = vrot.slane %v22, %v1424
    %v1426 = vmul.f32 %v1374, %v1425
    %v1427 = vmul.f32 %v1375, %v1425
    %v1428 = vmul.f32 %v1376, %v1425
    %v1429 = vmul.f32 %v1377, %v1425
    %v1430 = vmul.f32 %v1378, %v1425
    %v1431 = vmul.f32 %v1379, %v1425
    %v1432 = vmul.f32 %v1380, %v1425
    %v1433 = vmul.f32 %v1381, %v1425
    %v1434 = vmul.f32 %v1382, %v1425
    %v1435 = vmul.f32 %v1383, %v1425
    %v1436 = vmul.f32 %v1384, %v1425
    %v1437 = vmul.f32 %v1385, %v1425
    %v1438 = vmul.f32 %v1386, %v1425
    %v1439 = vmul.f32 %v1387, %v1425
    %v1440 = vmul.f32 %v1388, %v1425
    %v1441 = vmul.f32 %v1389, %v1425
    %v1442 = vlaneseq
    %v1443 = vshrl.u32 %v1442, 7
    %v1444 = vsub.s32 4, %v1443
    %v1445 = vrot.slane %v22, %v1444
    %v1446 = vmul.f32 %v1390, %v1445
    %v1447 = vmul.f32 %v1391, %v1445
    %v1448 = vmul.f32 %v1392, %v1445
    %v1449 = vmul.f32 %v1393, %v1445
    %v1450 = vmul.f32 %v1394, %v1445
    %v1451 = vmul.f32 %v1395, %v1445
    %v1452 = vmul.f32 %v1396, %v1445
    %v1453 = vmul.f32 %v1397, %v1445
    %v1454 = vmul.f32 %v1398, %v1445
    %v1455 = vmul.f32 %v1399, %v1445
    %v1456 = vmul.f32 %v1400, %v1445
    %v1457 = vmul.f32 %v1401, %v1445
    %v1458 = vmul.f32 %v1402, %v1445
    %v1459 = vmul.f32 %v1403, %v1445
    %v1460 = vmul.f32 %v1404, %v1445
    %v1461 = vmul.f32 %v1405, %v1445
    %v1462 = vadd.f32 %v1426, %v1446
    %v1463 = vadd.f32 %v1427, %v1447
    %v1464 = vadd.f32 %v1428, %v1448
    %v1465 = vadd.f32 %v1429, %v1449
    %v1466 = vadd.f32 %v1430, %v1450
    %v1467 = vadd.f32 %v1431, %v1451
    %v1468 = vadd.f32 %v1432, %v1452
    %v1469 = vadd.f32 %v1433, %v1453
    %v1470 = vadd.f32 %v1434, %v1454
    %v1471 = vadd.f32 %v1435, %v1455
    %v1472 = vadd.f32 %v1436, %v1456
    %v1473 = vadd.f32 %v1437, %v1457
    %v1474 = vadd.f32 %v1438, %v1458
    %v1475 = vadd.f32 %v1439, %v1459
    %v1476 = vadd.f32 %v1440, %v1460
    %v1477 = vadd.f32 %v1441, %v1461
    %v1478 = vlaneseq
    %v1479 = vshrl.u32 %v1478, 7
    %v1480 = vsub.s32 5, %v1479
    %v1481 = vrot.slane %v22, %v1480
    %v1482 = vmul.f32 %v1406, %v1481
    %v1483 = vmul.f32 %v1407, %v1481
    %v1484 = vmul.f32 %v1408, %v1481
    %v1485 = vmul.f32 %v1409, %v1481
    %v1486 = vmul.f32 %v1410, %v1481
    %v1487 = vmul.f32 %v1411, %v1481
    %v1488 = vmul.f32 %v1412, %v1481
    %v1489 = vmul.f32 %v1413, %v1481
    %v1490 = vmul.f32 %v1414, %v1481
    %v1491 = vmul.f32 %v1415, %v1481
    %v1492 = vmul.f32 %v1416, %v1481
    %v1493 = vmul.f32 %v1417, %v1481
    %v1494 = vmul.f32 %v1418, %v1481
    %v1495 = vmul.f32 %v1419, %v1481
    %v1496 = vmul.f32 %v1420, %v1481
    %v1497 = vmul.f32 %v1421, %v1481
    %v1498 = vadd.f32 %v1462, %v1482
    %v1499 = vadd.f32 %v1463, %v1483
    %v1500 = vadd.f32 %v1464, %v1484
    %v1501 = vadd.f32 %v1465, %v1485
    %v1502 = vadd.f32 %v1466, %v1486
    %v1503 = vadd.f32 %v1467, %v1487
    %v1504 = vadd.f32 %v1468, %v1488
    %v1505 = vadd.f32 %v1469, %v1489
    %v1506 = vadd.f32 %v1470, %v1490
    %v1507 = vadd.f32 %v1471, %v1491
    %v1508 = vadd.f32 %v1472, %v1492
    %v1509 = vadd.f32 %v1473, %v1493
    %v1510 = vadd.f32 %v1474, %v1494
    %v1511 = vadd.f32 %v1475, %v1495
    %v1512 = vadd.f32 %v1476, %v1496
    %v1513 = vadd.f32 %v1477, %v1497
    %v1514 = vadd.f32 %v1358, %v1498
    %v1515 = vadd.f32 %v1359, %v1499
    %v1516 = vadd.f32 %v1360, %v1500
    %v1517 = vadd.f32 %v1361, %v1501
    %v1518 = vadd.f32 %v1362, %v1502
    %v1519 = vadd.f32 %v1363, %v1503
    %v1520 = vadd.f32 %v1364, %v1504
    %v1521 = vadd.f32 %v1365, %v1505
    %v1522 = vadd.f32 %v1366, %v1506
    %v1523 = vadd.f32 %v1367, %v1507
    %v1524 = vadd.f32 %v1368, %v1508
    %v1525 = vadd.f32 %v1369, %v1509
    %v1526 = vadd.f32 %v1370, %v1510
    %v1527 = vadd.f32 %v1371, %v1511
    %v1528 = vadd.f32 %v1372, %v1512
    %v1529 = vadd.f32 %v1373, %v1513
    %s1530 = scalar_lea.vmem [#allocation3], 32
    %v1531 = vld [vmem:[%s1530 + $0x7] sm:$0xff]
    %v1532 = vld [vmem:[%s1530 + $0x27] sm:$0xff]
    %v1533 = vld [vmem:[%s1530 + $0x47] sm:$0xff]
    %v1534 = vld [vmem:[%s1530 + $0x67] sm:$0xff]
    %v1535 = vld [vmem:[%s1530 + $0x87] sm:$0xff]
    %v1536 = vld [vmem:[%s1530 + $0xa7] sm:$0xff]
    %v1537 = vld [vmem:[%s1530 + $0xc7] sm:$0xff]
    %v1538 = vld [vmem:[%s1530 + $0xe7] sm:$0xff]
    %v1539 = vld [vmem:[%s1530 + $0x117] sm:$0xff]
    %v1540 = vld [vmem:[%s1530 + $0x137] sm:$0xff]
    %v1541 = vld [vmem:[%s1530 + $0x157] sm:$0xff]
    %v1542 = vld [vmem:[%s1530 + $0x177] sm:$0xff]
    %v1543 = vld [vmem:[%s1530 + $0x197] sm:$0xff]
    %v1544 = vld [vmem:[%s1530 + $0x1b7] sm:$0xff]
    %v1545 = vld [vmem:[%s1530 + $0x1d7] sm:$0xff]
    %v1546 = vld [vmem:[%s1530 + $0x1f7] sm:$0xff]
    %s1547 = scalar_lea.vmem [#allocation2], 16
    %v1548 = vld [vmem:[%s1547] sm:$0xff]
    %v1549 = vld [vmem:[%s1547 + $0x10] sm:$0xff]
    %v1550 = vld [vmem:[%s1547 + $0x20] sm:$0xff]
    %v1551 = vld [vmem:[%s1547 + $0x30] sm:$0xff]
    %v1552 = vld [vmem:[%s1547 + $0x40] sm:$0xff]
    %v1553 = vld [vmem:[%s1547 + $0x50] sm:$0xff]
    %v1554 = vld [vmem:[%s1547 + $0x60] sm:$0xff]
    %v1555 = vld [vmem:[%s1547 + $0x70] sm:$0xff]
    %v1556 = vld [vmem:[%s1547 + $0x88] sm:$0xff]
    %v1557 = vld [vmem:[%s1547 + $0x98] sm:$0xff]
    %v1558 = vld [vmem:[%s1547 + $0xa8] sm:$0xff]
    %v1559 = vld [vmem:[%s1547 + $0xb8] sm:$0xff]
    %v1560 = vld [vmem:[%s1547 + $0xc8] sm:$0xff]
    %v1561 = vld [vmem:[%s1547 + $0xd8] sm:$0xff]
    %v1562 = vld [vmem:[%s1547 + $0xe8] sm:$0xff]
    %v1563 = vld [vmem:[%s1547 + $0xf8] sm:$0xff]
    %v1564 = vld [vmem:[%s1530 + $0x8] sm:$0xff]
    %v1565 = vld [vmem:[%s1530 + $0x28] sm:$0xff]
    %v1566 = vld [vmem:[%s1530 + $0x48] sm:$0xff]
    %v1567 = vld [vmem:[%s1530 + $0x68] sm:$0xff]
    %v1568 = vld [vmem:[%s1530 + $0x88] sm:$0xff]
    %v1569 = vld [vmem:[%s1530 + $0xa8] sm:$0xff]
    %v1570 = vld [vmem:[%s1530 + $0xc8] sm:$0xff]
    %v1571 = vld [vmem:[%s1530 + $0xe8] sm:$0xff]
    %v1572 = vld [vmem:[%s1530 + $0x118] sm:$0xff]
    %v1573 = vld [vmem:[%s1530 + $0x138] sm:$0xff]
    %v1574 = vld [vmem:[%s1530 + $0x158] sm:$0xff]
    %v1575 = vld [vmem:[%s1530 + $0x178] sm:$0xff]
    %v1576 = vld [vmem:[%s1530 + $0x198] sm:$0xff]
    %v1577 = vld [vmem:[%s1530 + $0x1b8] sm:$0xff]
    %v1578 = vld [vmem:[%s1530 + $0x1d8] sm:$0xff]
    %v1579 = vld [vmem:[%s1530 + $0x1f8] sm:$0xff]
    %v1580 = vlaneseq
    %v1581 = vshrl.u32 %v1580, 7
    %v1582 = vsub.s32 6, %v1581
    %v1583 = vrot.slane %v22, %v1582
    %v1584 = vmul.f32 %v1531, %v1583
    %v1585 = vmul.f32 %v1532, %v1583
    %v1586 = vmul.f32 %v1533, %v1583
    %v1587 = vmul.f32 %v1534, %v1583
    %v1588 = vmul.f32 %v1535, %v1583
    %v1589 = vmul.f32 %v1536, %v1583
    %v1590 = vmul.f32 %v1537, %v1583
    %v1591 = vmul.f32 %v1538, %v1583
    %v1592 = vmul.f32 %v1539, %v1583
    %v1593 = vmul.f32 %v1540, %v1583
    %v1594 = vmul.f32 %v1541, %v1583
    %v1595 = vmul.f32 %v1542, %v1583
    %v1596 = vmul.f32 %v1543, %v1583
    %v1597 = vmul.f32 %v1544, %v1583
    %v1598 = vmul.f32 %v1545, %v1583
    %v1599 = vmul.f32 %v1546, %v1583
    %v1600 = vlaneseq
    %v1601 = vshrl.u32 %v1600, 7
    %v1602 = vsub.s32 7, %v1601
    %v1603 = vrot.slane %v22, %v1602
    %v1604 = vmul.f32 %v1548, %v1603
    %v1605 = vmul.f32 %v1549, %v1603
    %v1606 = vmul.f32 %v1550, %v1603
    %v1607 = vmul.f32 %v1551, %v1603
    %v1608 = vmul.f32 %v1552, %v1603
    %v1609 = vmul.f32 %v1553, %v1603
    %v1610 = vmul.f32 %v1554, %v1603
    %v1611 = vmul.f32 %v1555, %v1603
    %v1612 = vmul.f32 %v1556, %v1603
    %v1613 = vmul.f32 %v1557, %v1603
    %v1614 = vmul.f32 %v1558, %v1603
    %v1615 = vmul.f32 %v1559, %v1603
    %v1616 = vmul.f32 %v1560, %v1603
    %v1617 = vmul.f32 %v1561, %v1603
    %v1618 = vmul.f32 %v1562, %v1603
    %v1619 = vmul.f32 %v1563, %v1603
    %v1620 = vadd.f32 %v1584, %v1604
    %v1621 = vadd.f32 %v1585, %v1605
    %v1622 = vadd.f32 %v1586, %v1606
    %v1623 = vadd.f32 %v1587, %v1607
    %v1624 = vadd.f32 %v1588, %v1608
    %v1625 = vadd.f32 %v1589, %v1609
    %v1626 = vadd.f32 %v1590, %v1610
    %v1627 = vadd.f32 %v1591, %v1611
    %v1628 = vadd.f32 %v1592, %v1612
    %v1629 = vadd.f32 %v1593, %v1613
    %v1630 = vadd.f32 %v1594, %v1614
    %v1631 = vadd.f32 %v1595, %v1615
    %v1632 = vadd.f32 %v1596, %v1616
    %v1633 = vadd.f32 %v1597, %v1617
    %v1634 = vadd.f32 %v1598, %v1618
    %v1635 = vadd.f32 %v1599, %v1619
    %v1636 = vlaneseq
    %v1637 = vshrl.u32 %v1636, 7
    %v1638 = vsub.s32 0, %v1637
    %v1639 = vrot.slane %v23, %v1638
    %v1640 = vmul.f32 %v1564, %v1639
    %v1641 = vmul.f32 %v1565, %v1639
    %v1642 = vmul.f32 %v1566, %v1639
    %v1643 = vmul.f32 %v1567, %v1639
    %v1644 = vmul.f32 %v1568, %v1639
    %v1645 = vmul.f32 %v1569, %v1639
    %v1646 = vmul.f32 %v1570, %v1639
    %v1647 = vmul.f32 %v1571, %v1639
    %v1648 = vmul.f32 %v1572, %v1639
    %v1649 = vmul.f32 %v1573, %v1639
    %v1650 = vmul.f32 %v1574, %v1639
    %v1651 = vmul.f32 %v1575, %v1639
    %v1652 = vmul.f32 %v1576, %v1639
    %v1653 = vmul.f32 %v1577, %v1639
    %v1654 = vmul.f32 %v1578, %v1639
    %v1655 = vmul.f32 %v1579, %v1639
    %v1656 = vadd.f32 %v1620, %v1640
    %v1657 = vadd.f32 %v1621, %v1641
    %v1658 = vadd.f32 %v1622, %v1642
    %v1659 = vadd.f32 %v1623, %v1643
    %v1660 = vadd.f32 %v1624, %v1644
    %v1661 = vadd.f32 %v1625, %v1645
    %v1662 = vadd.f32 %v1626, %v1646
    %v1663 = vadd.f32 %v1627, %v1647
    %v1664 = vadd.f32 %v1628, %v1648
    %v1665 = vadd.f32 %v1629, %v1649
    %v1666 = vadd.f32 %v1630, %v1650
    %v1667 = vadd.f32 %v1631, %v1651
    %v1668 = vadd.f32 %v1632, %v1652
    %v1669 = vadd.f32 %v1633, %v1653
    %v1670 = vadd.f32 %v1634, %v1654
    %v1671 = vadd.f32 %v1635, %v1655
    %v1672 = vadd.f32 %v1514, %v1656
    %v1673 = vadd.f32 %v1515, %v1657
    %v1674 = vadd.f32 %v1516, %v1658
    %v1675 = vadd.f32 %v1517, %v1659
    %v1676 = vadd.f32 %v1518, %v1660
    %v1677 = vadd.f32 %v1519, %v1661
    %v1678 = vadd.f32 %v1520, %v1662
    %v1679 = vadd.f32 %v1521, %v1663
    %v1680 = vadd.f32 %v1522, %v1664
    %v1681 = vadd.f32 %v1523, %v1665
    %v1682 = vadd.f32 %v1524, %v1666
    %v1683 = vadd.f32 %v1525, %v1667
    %v1684 = vadd.f32 %v1526, %v1668
    %v1685 = vadd.f32 %v1527, %v1669
    %v1686 = vadd.f32 %v1528, %v1670
    %v1687 = vadd.f32 %v1529, %v1671
    %v1688 = vlaneseq
    %v1689 = vshrl.u32 %v1688, 7
    %v1690 = vsub.s32 4, %v1689
    %v1691 = vrot.slane %v23, %v1690
    %v1692 = vmul.f32 %v1672, %v1691
    %v1693 = vmul.f32 %v1673, %v1691
    %v1694 = vmul.f32 %v1674, %v1691
    %v1695 = vmul.f32 %v1675, %v1691
    %v1696 = vmul.f32 %v1676, %v1691
    %v1697 = vmul.f32 %v1677, %v1691
    %v1698 = vmul.f32 %v1678, %v1691
    %v1699 = vmul.f32 %v1679, %v1691
    %v1700 = vmul.f32 %v1680, %v1691
    %v1701 = vmul.f32 %v1681, %v1691
    %v1702 = vmul.f32 %v1682, %v1691
    %v1703 = vmul.f32 %v1683, %v1691
    %v1704 = vmul.f32 %v1684, %v1691
    %v1705 = vmul.f32 %v1685, %v1691
    %v1706 = vmul.f32 %v1686, %v1691
    %v1707 = vmul.f32 %v1687, %v1691
    %v1708 = vlaneseq
    %v1709 = vshrl.u32 %v1708, 7
    %v1710 = vsub.s32 5, %v1709
    %v1711 = vrot.slane %v23, %v1710
    %v1712 = vadd.f32 %v1692, %v1711
    %v1713 = vadd.f32 %v1693, %v1711
    %v1714 = vadd.f32 %v1694, %v1711
    %v1715 = vadd.f32 %v1695, %v1711
    %v1716 = vadd.f32 %v1696, %v1711
    %v1717 = vadd.f32 %v1697, %v1711
    %v1718 = vadd.f32 %v1698, %v1711
    %v1719 = vadd.f32 %v1699, %v1711
    %v1720 = vadd.f32 %v1700, %v1711
    %v1721 = vadd.f32 %v1701, %v1711
    %v1722 = vadd.f32 %v1702, %v1711
    %v1723 = vadd.f32 %v1703, %v1711
    %v1724 = vadd.f32 %v1704, %v1711
    %v1725 = vadd.f32 %v1705, %v1711
    %v1726 = vadd.f32 %v1706, %v1711
    %v1727 = vadd.f32 %v1707, %v1711
    %vm1728 = vcmp.gt.f32.partialorder %v1712, 0.0
    %vm1729 = vcmp.gt.f32.partialorder %v1713, 0.0
    %vm1730 = vcmp.gt.f32.partialorder %v1714, 0.0
    %vm1731 = vcmp.gt.f32.partialorder %v1715, 0.0
    %vm1732 = vcmp.gt.f32.partialorder %v1716, 0.0
    %vm1733 = vcmp.gt.f32.partialorder %v1717, 0.0
    %vm1734 = vcmp.gt.f32.partialorder %v1718, 0.0
    %vm1735 = vcmp.gt.f32.partialorder %v1719, 0.0
    %vm1736 = vcmp.gt.f32.partialorder %v1720, 0.0
    %vm1737 = vcmp.gt.f32.partialorder %v1721, 0.0
    %vm1738 = vcmp.gt.f32.partialorder %v1722, 0.0
    %vm1739 = vcmp.gt.f32.partialorder %v1723, 0.0
    %vm1740 = vcmp.gt.f32.partialorder %v1724, 0.0
    %vm1741 = vcmp.gt.f32.partialorder %v1725, 0.0
    %vm1742 = vcmp.gt.f32.partialorder %v1726, 0.0
    %vm1743 = vcmp.gt.f32.partialorder %v1727, 0.0
    %v1744 = vlaneseq
    %v1745 = vshrl.u32 %v1744, 7
    %v1746 = vsub.s32 6, %v1745
    %v1747 = vrot.slane %v23, %v1746
    %v1748 = vmul.f32 %v1747, %v1712
    %v1749 = vmul.f32 %v1747, %v1713
    %v1750 = vmul.f32 %v1747, %v1714
    %v1751 = vmul.f32 %v1747, %v1715
    %v1752 = vmul.f32 %v1747, %v1716
    %v1753 = vmul.f32 %v1747, %v1717
    %v1754 = vmul.f32 %v1747, %v1718
    %v1755 = vmul.f32 %v1747, %v1719
    %v1756 = vmul.f32 %v1747, %v1720
    %v1757 = vmul.f32 %v1747, %v1721
    %v1758 = vmul.f32 %v1747, %v1722
    %v1759 = vmul.f32 %v1747, %v1723
    %v1760 = vmul.f32 %v1747, %v1724
    %v1761 = vmul.f32 %v1747, %v1725
    %v1762 = vmul.f32 %v1747, %v1726
    %v1763 = vmul.f32 %v1747, %v1727
    %v1764 = vsel %vm1728, %v1712, %v1748
    %v1765 = vsel %vm1729, %v1713, %v1749
    %v1766 = vsel %vm1730, %v1714, %v1750
    %v1767 = vsel %vm1731, %v1715, %v1751
    %v1768 = vsel %vm1732, %v1716, %v1752
    %v1769 = vsel %vm1733, %v1717, %v1753
    %v1770 = vsel %vm1734, %v1718, %v1754
    %v1771 = vsel %vm1735, %v1719, %v1755
    %v1772 = vsel %vm1736, %v1720, %v1756
    %v1773 = vsel %vm1737, %v1721, %v1757
    %v1774 = vsel %vm1738, %v1722, %v1758
    %v1775 = vsel %vm1739, %v1723, %v1759
    %v1776 = vsel %vm1740, %v1724, %v1760
    %v1777 = vsel %vm1741, %v1725, %v1761
    %v1778 = vsel %vm1742, %v1726, %v1762
    %v1779 = vsel %vm1743, %v1727, %v1763
    %v1780 = vld [vmem:[%s4] sm:$0x3]
    %v1781 = vld [vmem:[%s3] sm:$0xff]
    %v1782 = vld [vmem:[%s3 + $0x8] sm:$0xff]
    %v1783 = vld [vmem:[%s3 + $0x10] sm:$0xff]
    %v1784 = vld [vmem:[%s3 + $0x18] sm:$0xff]
    %v1785 = vld [vmem:[%s3 + $0x20] sm:$0xff]
    %v1786 = vld [vmem:[%s3 + $0x28] sm:$0xff]
    %v1787 = vld [vmem:[%s3 + $0x30] sm:$0xff]
    %v1788 = vld [vmem:[%s3 + $0x38] sm:$0xff]
    %v1789 = vld [vmem:[%s3 + $0x40] sm:$0xff]
    %v1790 = vld [vmem:[%s3 + $0x48] sm:$0xff]
    %v1791 = vld [vmem:[%s3 + $0x50] sm:$0xff]
    %v1792 = vld [vmem:[%s3 + $0x58] sm:$0xff]
    %v1793 = vld [vmem:[%s3 + $0x60] sm:$0xff]
    %v1794 = vld [vmem:[%s3 + $0x68] sm:$0xff]
    %v1795 = vld [vmem:[%s3 + $0x70] sm:$0xff]
    %v1796 = vld [vmem:[%s3 + $0x78] sm:$0xff]
    %1797 = vmatprep.subr.mxu0 0.0
    %1798 = vmatpush1.msra.mxu0 %v1781
    %1799 = vmatprep.subr.mxu0 0.0
    %1800 = vmatpush1.msra.mxu0 %v1782
    %1801 = vmatprep.subr.mxu0 0.0
    %1802 = vmatpush1.msra.mxu0 %v1783
    %1803 = vmatprep.subr.mxu0 0.0
    %1804 = vmatpush1.msra.mxu0 %v1784
    %1805 = vmatprep.subr.mxu0 0.0
    %1806 = vmatpush1.msra.mxu0 %v1785
    %1807 = vmatprep.subr.mxu0 0.0
    %1808 = vmatpush1.msra.mxu0 %v1786
    %1809 = vmatprep.subr.mxu0 0.0
    %1810 = vmatpush1.msra.mxu0 %v1787
    %1811 = vmatprep.subr.mxu0 0.0
    %1812 = vmatpush1.msra.mxu0 %v1788
    %1813 = vmatprep.subr.mxu0 0.0
    %1814 = vmatpush1.msra.mxu0 %v1789
    %1815 = vmatprep.subr.mxu0 0.0
    %1816 = vmatpush1.msra.mxu0 %v1790
    %1817 = vmatprep.subr.mxu0 0.0
    %1818 = vmatpush1.msra.mxu0 %v1791
    %1819 = vmatprep.subr.mxu0 0.0
    %1820 = vmatpush1.msra.mxu0 %v1792
    %1821 = vmatprep.subr.mxu0 0.0
    %1822 = vmatpush1.msra.mxu0 %v1793
    %1823 = vmatprep.subr.mxu0 0.0
    %1824 = vmatpush1.msra.mxu0 %v1794
    %1825 = vmatprep.subr.mxu0 0.0
    %1826 = vmatpush1.msra.mxu0 %v1795
    %1827 = vmatprep.subr.mxu0 0.0
    %1828 = vmatpush1.msra.mxu0 %v1796
    %1829 = vmatprep.subr.mxu0 0.0
    %1830 = vmatpush1.msra.mxu0 0.0
    %1831 = vmatprep.subr.mxu0 0.0
    %1832 = vmatpush1.msra.mxu0 0.0
    %1833 = vmatprep.subr.mxu0 0.0
    %1834 = vmatpush1.msra.mxu0 0.0
    %1835 = vmatprep.subr.mxu0 0.0
    %1836 = vmatpush1.msra.mxu0 0.0
    %1837 = vmatprep.subr.mxu0 0.0
    %1838 = vmatpush1.msra.mxu0 0.0
    %1839 = vmatprep.subr.mxu0 0.0
    %1840 = vmatpush1.msra.mxu0 0.0
    %1841 = vmatprep.subr.mxu0 0.0
    %1842 = vmatpush1.msra.mxu0 0.0
    %1843 = vmatprep.subr.mxu0 0.0
    %1844 = vmatpush1.msra.mxu0 0.0
    %1845 = vmatprep.subr.mxu0 0.0
    %1846 = vmatpush1.msra.mxu0 0.0
    %1847 = vmatprep.subr.mxu0 0.0
    %1848 = vmatpush1.msra.mxu0 0.0
    %1849 = vmatprep.subr.mxu0 0.0
    %1850 = vmatpush1.msra.mxu0 0.0
    %1851 = vmatprep.subr.mxu0 0.0
    %1852 = vmatpush1.msra.mxu0 0.0
    %1853 = vmatprep.subr.mxu0 0.0
    %1854 = vmatpush1.msra.mxu0 0.0
    %1855 = vmatprep.subr.mxu0 0.0
    %1856 = vmatpush1.msra.mxu0 0.0
    %1857 = vmatprep.subr.mxu0 0.0
    %1858 = vmatpush1.msra.mxu0 0.0
    %1859 = vmatprep.subr.mxu0 0.0
    %1860 = vmatpush1.msra.mxu0 0.0
    %1861 = vmatprep.mubr.f32.mxu0 0.0
    %1862 = vmatmul.mubr.f32.gmra.mrb[0].mxu0 %v1764
    %v1863 = vpop.f32.mrb[0].mxu0
    %v1864 = vadd.f32 0.0, %v1863
    %v1865 = vpop.f32.mrb[0].mxu0
    %1866 = vmatprep.mubr.f32.mxu0 0.0
    %1867 = vmatmul.mubr.f32.gmra.mrb[0].mxu0 %v1765
    %v1868 = vpop.f32.mrb[0].mxu0
    %v1869 = vadd.f32 0.0, %v1868
    %v1870 = vpop.f32.mrb[0].mxu0
    %1871 = vmatprep.mubr.f32.mxu0 0.0
    %1872 = vmatmul.mubr.f32.gmra.mrb[0].mxu0 %v1766
    %v1873 = vpop.f32.mrb[0].mxu0
    %v1874 = vadd.f32 0.0, %v1873
    %v1875 = vpop.f32.mrb[0].mxu0
    %1876 = vmatprep.mubr.f32.mxu0 0.0
    %1877 = vmatmul.mubr.f32.gmra.mrb[0].mxu0 %v1767
    %v1878 = vpop.f32.mrb[0].mxu0
    %v1879 = vadd.f32 0.0, %v1878
    %v1880 = vpop.f32.mrb[0].mxu0
    %1881 = vmatprep.mubr.f32.mxu0 0.0
    %1882 = vmatmul.mubr.f32.gmra.mrb[0].mxu0 %v1768
    %v1883 = vpop.f32.mrb[0].mxu0
    %v1884 = vadd.f32 0.0, %v1883
    %v1885 = vpop.f32.mrb[0].mxu0
    %1886 = vmatprep.mubr.f32.mxu0 0.0
    %1887 = vmatmul.mubr.f32.gmra.mrb[0].mxu0 %v1769
    %v1888 = vpop.f32.mrb[0].mxu0
    %v1889 = vadd.f32 0.0, %v1888
    %v1890 = vpop.f32.mrb[0].mxu0
    %1891 = vmatprep.mubr.f32.mxu0 0.0
    %1892 = vmatmul.mubr.f32.gmra.mrb[0].mxu0 %v1770
    %v1893 = vpop.f32.mrb[0].mxu0
    %v1894 = vadd.f32 0.0, %v1893
    %v1895 = vpop.f32.mrb[0].mxu0
    %1896 = vmatprep.mubr.f32.mxu0 0.0
    %1897 = vmatmul.mubr.f32.gmra.mrb[0].mxu0 %v1771
    %v1898 = vpop.f32.mrb[0].mxu0
    %v1899 = vadd.f32 0.0, %v1898
    %v1900 = vpop.f32.mrb[0].mxu0
    %1901 = vmatprep.mubr.f32.mxu0 0.0
    %1902 = vmatmul.mubr.f32.gmra.mrb[0].mxu0 %v1772
    %v1903 = vpop.f32.mrb[0].mxu0
    %v1904 = vadd.f32 0.0, %v1903
    %v1905 = vpop.f32.mrb[0].mxu0
    %1906 = vmatprep.mubr.f32.mxu0 0.0
    %1907 = vmatmul.mubr.f32.gmra.mrb[0].mxu0 %v1773
    %v1908 = vpop.f32.mrb[0].mxu0
    %v1909 = vadd.f32 0.0, %v1908
    %v1910 = vpop.f32.mrb[0].mxu0
    %1911 = vmatprep.mubr.f32.mxu0 0.0
    %1912 = vmatmul.mubr.f32.gmra.mrb[0].mxu0 %v1774
    %v1913 = vpop.f32.mrb[0].mxu0
    %v1914 = vadd.f32 0.0, %v1913
    %v1915 = vpop.f32.mrb[0].mxu0
    %1916 = vmatprep.mubr.f32.mxu0 0.0
    %1917 = vmatmul.mubr.f32.gmra.mrb[0].mxu0 %v1775
    %v1918 = vpop.f32.mrb[0].mxu0
    %v1919 = vadd.f32 0.0, %v1918
    %v1920 = vpop.f32.mrb[0].mxu0
    %1921 = vmatprep.mubr.f32.mxu0 0.0
    %1922 = vmatmul.mubr.f32.gmra.mrb[0].mxu0 %v1776
    %v1923 = vpop.f32.mrb[0].mxu0
    %v1924 = vadd.f32 0.0, %v1923
    %v1925 = vpop.f32.mrb[0].mxu0
    %1926 = vmatprep.mubr.f32.mxu0 0.0
    %1927 = vmatmul.mubr.f32.gmra.mrb[0].mxu0 %v1777
    %v1928 = vpop.f32.mrb[0].mxu0
    %v1929 = vadd.f32 0.0, %v1928
    %v1930 = vpop.f32.mrb[0].mxu0
    %1931 = vmatprep.mubr.f32.mxu0 0.0
    %1932 = vmatmul.mubr.f32.gmra.mrb[0].mxu0 %v1778
    %v1933 = vpop.f32.mrb[0].mxu0
    %v1934 = vadd.f32 0.0, %v1933
    %v1935 = vpop.f32.mrb[0].mxu0
    %1936 = vmatprep.mubr.f32.mxu0 0.0
    %1937 = vmatmul.mubr.f32.gmra.mrb[0].mxu0 %v1779
    %v1938 = vpop.f32.mrb[0].mxu0
    %v1939 = vadd.f32 0.0, %v1938
    %v1940 = vpop.f32.mrb[0].mxu0
    %1941 = vdwg.mxu0
    %v1942 = vlaneseq
    %v1943 = vshrl.u32 %v1942, 7
    %v1944 = vsub.s32 0, %v1943
    %v1945 = vrot.slane %v1780, %v1944
    %v1946 = vmul.f32 %v1864, %v1945
    %v1947 = vmul.f32 %v1869, %v1945
    %v1948 = vmul.f32 %v1874, %v1945
    %v1949 = vmul.f32 %v1879, %v1945
    %v1950 = vmul.f32 %v1884, %v1945
    %v1951 = vmul.f32 %v1889, %v1945
    %v1952 = vmul.f32 %v1894, %v1945
    %v1953 = vmul.f32 %v1899, %v1945
    %v1954 = vmul.f32 %v1904, %v1945
    %v1955 = vmul.f32 %v1909, %v1945
    %v1956 = vmul.f32 %v1914, %v1945
    %v1957 = vmul.f32 %v1919, %v1945
    %v1958 = vmul.f32 %v1924, %v1945
    %v1959 = vmul.f32 %v1929, %v1945
    %v1960 = vmul.f32 %v1934, %v1945
    %v1961 = vmul.f32 %v1939, %v1945
    %v1962 = vlaneseq
    %v1963 = vshrl.u32 %v1962, 7
    %v1964 = vsub.s32 1, %v1963
    %v1965 = vrot.slane %v1780, %v1964
    %v1966 = vadd.f32 %v1946, %v1965
    %v1967 = vadd.f32 %v1947, %v1965
    %v1968 = vadd.f32 %v1948, %v1965
    %v1969 = vadd.f32 %v1949, %v1965
    %v1970 = vadd.f32 %v1950, %v1965
    %v1971 = vadd.f32 %v1951, %v1965
    %v1972 = vadd.f32 %v1952, %v1965
    %v1973 = vadd.f32 %v1953, %v1965
    %v1974 = vadd.f32 %v1954, %v1965
    %v1975 = vadd.f32 %v1955, %v1965
    %v1976 = vadd.f32 %v1956, %v1965
    %v1977 = vadd.f32 %v1957, %v1965
    %v1978 = vadd.f32 %v1958, %v1965
    %v1979 = vadd.f32 %v1959, %v1965
    %v1980 = vadd.f32 %v1960, %v1965
    %v1981 = vadd.f32 %v1961, %v1965
    %1982 = vst [vmem:[#allocation4] sm:$0xff] %v1966
    %1983 = vst [vmem:[#allocation4 + $0x8] sm:$0xff] %v1967
    %1984 = vst [vmem:[#allocation4 + $0x10] sm:$0xff] %v1968
    %1985 = vst [vmem:[#allocation4 + $0x18] sm:$0xff] %v1969
    %1986 = vst [vmem:[#allocation4 + $0x20] sm:$0xff] %v1970
    %1987 = vst [vmem:[#allocation4 + $0x28] sm:$0xff] %v1971
    %1988 = vst [vmem:[#allocation4 + $0x30] sm:$0xff] %v1972
    %1989 = vst [vmem:[#allocation4 + $0x38] sm:$0xff] %v1973
    %1990 = vst [vmem:[#allocation4 + $0x40] sm:$0xff] %v1974
    %1991 = vst [vmem:[#allocation4 + $0x48] sm:$0xff] %v1975
    %1992 = vst [vmem:[#allocation4 + $0x50] sm:$0xff] %v1976
    %1993 = vst [vmem:[#allocation4 + $0x58] sm:$0xff] %v1977
    %1994 = vst [vmem:[#allocation4 + $0x60] sm:$0xff] %v1978
    %1995 = vst [vmem:[#allocation4 + $0x68] sm:$0xff] %v1979
    %1996 = vst [vmem:[#allocation4 + $0x70] sm:$0xff] %v1980
    %1997 = vst [vmem:[#allocation4 + $0x78] sm:$0xff] %v1981
    // Predicated region
    $region22: #{tpu_custom_call.1} parent=1 // pred_check
      _
    $region23: #{tpu_custom_call.1} parent=1 // pred_check_branch
      %1999 = sbr.rel (0) target = $region25
    $region24: #{tpu_custom_call.1} parent=1 // pred_region
      %s2001 = ssub.s32 2048, 2048
      %2002 = vsyncadd [#allocation5], %s2001
      %s2003 = sshll.u32 [#allocation4], 4
      %s2004 = int_to_ptr.vmem [resolvable:$true] %s2003
      %2009 = dma.vmem_to_hbm [thread:$0]  %s2004, 2048, %s5, [#allocation5], 128, 128, 8
    $region25: #{tpu_custom_call.1} parent=1 // pred_fallthru
      _
    // Predicated region
    $region26: #{tpu_custom_call.1} parent=1 // pred_check
      _
    $region27: #{tpu_custom_call.1} parent=1 // pred_check_branch
      %2011 = sbr.rel (0) target = $region29
    $region28: #{tpu_custom_call.1} parent=1 // pred_region
      %2012 = dma.done [#allocation5], 2048
    $region29: #{tpu_custom_call.1} parent=1 // pred_fallthru
      _
    %2013 = vsyncpa [#allocation5], 1

</llo_original>
